<compile_context>
chip_gen: v6e
topology: v6e:2x2x1
jax: 0.10.0
libtpu: 0.0.40
codegen_flags: <defaults>
</compile_context>

<pallas_src>
import functools
import math

import jax
import jax.numpy as jnp
from jax import lax
from jax.experimental import pallas as pl
from jax.experimental.pallas import tpu as pltpu

VMEM = pl.BlockSpec(memory_space=pltpu.MemorySpace.VMEM)
LANE = 128
NEG_BIG = -1e30


# ----------------------------------------------------------------------------
# Single-pass static top-k: rank-based selection (no serial argmax chain).
# Returns the new node mask in both (N,1) and (1,N) orientations.
# ----------------------------------------------------------------------------
def _topk_masks(score, m_col, m_row, idx_col, idx_row, eye_nn, k):
    # Row-oriented copy of the score column via identity projection (no transpose op):
    s_row = jnp.sum(score * eye_nn, axis=0, keepdims=True)                  # (1,N)
    # beats[i,j] = 1 if kept node j outranks node i (score, then index tie-break).
    beats = jnp.where(
        (m_row > 0.0)
        & ((s_row > score) | ((s_row == score) & (idx_row < idx_col))),
        1.0, 0.0)                                                           # (N,N) VPU
    rank = jnp.sum(beats, axis=-1, keepdims=True)                           # (N,1) lane reduce
    keep_col = jnp.where((rank < float(k)) & (m_col > 0.0), 1.0, 0.0)       # (N,1)
    keep_row = jnp.sum(keep_col * eye_nn, axis=0, keepdims=True)            # (1,N)
    return keep_col, keep_row


# ----------------------------------------------------------------------------
# Fused forward kernel: all ConvPool blocks + hierarchical readout + MLP head.
# ----------------------------------------------------------------------------
def _sag_fused_kernel(*refs, num_convs, ks, hid):
    adj_ref, feat_ref = refs[0], refs[1]
    blk = refs[2:2 + 4 * num_convs]
    (w1a_ref, w1b_ref, b1_ref, w2_ref, b2_ref, w3_ref, b3_ref) = \
        refs[2 + 4 * num_convs:2 + 4 * num_convs + 7]
    o_ref = refs[-1]

    n = adj_ref.shape[0]
    a = adj_ref[...]                                   # (N,N) f32 (0/1 + self loops)
    a_bf = a.astype(jnp.bfloat16)                      # exact cast, MXU operand
    x = feat_ref[...]                                  # (N,Din)

    # Hoisted index / identity helpers (used by every block).
    idx_col = lax.broadcasted_iota(jnp.int32, (n, 1), 0)
    idx_row = lax.broadcasted_iota(jnp.int32, (1, n), 1)
    eye_nn = (idx_col == idx_row).astype(jnp.float32)  # (N,N) identity

    m_col = jnp.ones((n, 1), jnp.float32)              # current node mask (column)
    m_row = jnp.ones((1, n), jnp.float32)              # current node mask (row)

    ro_avg = jnp.zeros((1, hid), jnp.float32)          # accumulated mean readout
    ro_max = jnp.zeros((1, hid), jnp.float32)          # accumulated max readout

    for i in range(num_convs):
        cw = blk[4 * i][...]                           # (din, hid)
        cb = blk[4 * i + 1][...]                       # (1, hid)
        sw = blk[4 * i + 2][...]                       # (1, hid)  score weight (row)
        sb = blk[4 * i + 3][...]                       # (1, 1)
        k = ks[i]

        # masked degrees of the current subgraph: VPU multiply + lane reduce (no MXU).
        deg = jnp.sum(a * m_row, axis=-1, keepdims=True)          # (N,1)
        dinv = lax.rsqrt(jnp.maximum(deg, 1.0))                   # (N,1)

        # GraphConv #1 (norm='both'):  h = relu(Dinv A Dinv (x*m) W + b) * m
        xm = (x * m_col).astype(jnp.bfloat16)
        xw = jnp.dot(xm, cw.astype(jnp.bfloat16),
                     preferred_element_type=jnp.float32)          # (N,H)  MXU
        agg = jnp.dot(a_bf, (dinv * xw).astype(jnp.bfloat16),
                      preferred_element_type=jnp.float32)         # (N,H)  MXU
        h = jnp.maximum(dinv * agg + cb, 0.0) * m_col             # (N,H)

        # GraphConv #2 (score, Dout=1), reassociated so the MXU output is lane-dense:
        #   score = Dinv ((A (Dinv h)) @ w_s) + b_s
        agg2 = jnp.dot(a_bf, (dinv * h).astype(jnp.bfloat16),
                       preferred_element_type=jnp.float32)        # (N,H)  MXU
        score = dinv * jnp.sum(agg2 * sw, axis=-1, keepdims=True) + sb   # (N,1) VPU

        # static top-k node selection (replaces dgl.topk_nodes / node_subgraph)
        nm_col, nm_row = _topk_masks(score, m_col, m_row, idx_col, idx_row, eye_nn, k)

        # SAGPool gating + hierarchical readout (mean || max over kept nodes)
        gated = h * jnp.tanh(score) * nm_col                      # (N,H)
        ro_avg = ro_avg + jnp.sum(gated, axis=0, keepdims=True) * (1.0 / k)
        ro_max = ro_max + jnp.max(jnp.where(nm_col > 0.0, gated, -jnp.inf),
                                  axis=0, keepdims=True)

        x, m_col, m_row = gated, nm_col, nm_row

    # MLP head: relu(lin1) -> dropout(p=0) -> relu(lin2) -> log_softmax(lin3)
    # lin1 is applied as two half-weight matmuls (mean half + max half) so the
    # readout concat never materializes.
    z1 = (jnp.dot(ro_avg.astype(jnp.bfloat16), w1a_ref[...].astype(jnp.bfloat16),
                  preferred_element_type=jnp.float32)
          + jnp.dot(ro_max.astype(jnp.bfloat16), w1b_ref[...].astype(jnp.bfloat16),
                    preferred_element_type=jnp.float32)
          + b1_ref[...])
    h1 = jnp.maximum(z1, 0.0)
    # TODO(synk): dropout with p>0 would need pltpu.prng_seed/prng_random_bits; p=0 here.
    z2 = jnp.dot(h1.astype(jnp.bfloat16), w2_ref[...].astype(jnp.bfloat16),
                 preferred_element_type=jnp.float32) + b2_ref[...]
    h2 = jnp.maximum(z2, 0.0)
    logits = jnp.dot(h2.astype(jnp.bfloat16), w3_ref[...].astype(jnp.bfloat16),
                     preferred_element_type=jnp.float32) + b3_ref[...]   # (1,128) padded
    mx = jnp.max(logits, axis=-1, keepdims=True)
    z = logits - mx
    lse = jnp.log(jnp.sum(jnp.exp(z), axis=-1, keepdims=True))
    o_ref[...] = z - lse                                                 # lane-dense store


# ----------------------------------------------------------------------------
# Wrapper: one pallas_call for the whole forward, slice off the lane padding.
# ----------------------------------------------------------------------------
def sag_network_forward(adj, feat, params, *, num_convs, pool_ratio, hid_dim, out_dim):
    n = feat.shape[0]
    ks, cur = [], n
    for _ in range(num_convs):
        cur = max(1, int(math.ceil(pool_ratio * cur)))   # static k per block
        ks.append(cur)

    inputs = [adj, feat]
    for p in params["convpools"]:
        inputs += [p["conv_w"], p["conv_b"], p["score_w_row"], p["score_b"]]
    inputs += [params["lin1_w_avg"], params["lin1_w_max"], params["lin1_b"],
               params["lin2_w"], params["lin2_b"],
               params["lin3_w_pad"], params["lin3_b_pad"]]

    padded = pl.pallas_call(
        functools.partial(_sag_fused_kernel, num_convs=num_convs,
                          ks=tuple(ks), hid=hid_dim),
        out_shape=jax.ShapeDtypeStruct((1, LANE), jnp.float32),
        in_specs=[VMEM] * len(inputs),
        out_specs=VMEM,
    )(*inputs)
    return padded[:, :out_dim]


# ----------------------------------------------------------------------------
# Deterministic parameter init (weights pre-arranged for the fused kernel)
# ----------------------------------------------------------------------------
def init_params(key, in_dim, hid_dim, out_dim, num_convs):
    params = {"convpools": []}
    for i in range(num_convs):
        din = in_dim if i == 0 else hid_dim
        key, k1, k2 = jax.random.split(key, 3)
        params["convpools"].append({
            "conv_w": 0.1 * jax.random.normal(k1, (din, hid_dim), jnp.float32),
            "conv_b": jnp.zeros((1, hid_dim), jnp.float32),
            # score GraphConv weight stored as a (1, hid) row so the Dout=1
            # projection is a VPU multiply + lane reduce inside the kernel.
            "score_w_row": 0.1 * jax.random.normal(k2, (1, hid_dim), jnp.float32),
            "score_b": jnp.zeros((1, 1), jnp.float32),
        })
    key, k1, k2, k3 = jax.random.split(key, 4)
    w1 = 0.1 * jax.random.normal(k1, (hid_dim * 2, hid_dim), jnp.float32)
    params["lin1_w_avg"] = w1[:hid_dim]      # half acting on the mean readout
    params["lin1_w_max"] = w1[hid_dim:]      # half acting on the max readout
    params["lin1_b"] = jnp.zeros((1, hid_dim), jnp.float32)
    params["lin2_w"] = 0.1 * jax.random.normal(k2, (hid_dim, hid_dim // 2), jnp.float32)
    params["lin2_b"] = jnp.zeros((1, hid_dim // 2), jnp.float32)
    w3 = 0.1 * jax.random.normal(k3, (hid_dim // 2, out_dim), jnp.float32)
    # pad lin3 to 128 output lanes so the kernel's single store is lane-dense;
    # padded classes get a -1e30 bias so they vanish under log_softmax.
    params["lin3_w_pad"] = jnp.zeros((hid_dim // 2, LANE), jnp.float32).at[:, :out_dim].set(w3)
    params["lin3_b_pad"] = jnp.full((1, LANE), NEG_BIG, jnp.float32).at[:, :out_dim].set(0.0)
    return params


if __name__ == "__main__":
    N = 16          # nodes in the (single) graph
    IN_DIM = 8
    HID_DIM = 32
    OUT_DIM = 4     # number of classes
    NUM_CONVS = 3
    POOL_RATIO = 0.5

    key = jax.random.PRNGKey(0)
    key, k_adj, k_feat, k_par = jax.random.split(key, 4)

    # random undirected graph with self-loops (symmetric dense adjacency)
    upper = (jax.random.uniform(k_adj, (N, N)) < 0.3).astype(jnp.float32)
    upper = jnp.triu(upper, 1)
    adj = upper + upper.T + jnp.eye(N, dtype=jnp.float32)

    feat = jax.random.normal(k_feat, (N, IN_DIM), jnp.float32)
    params = init_params(k_par, IN_DIM, HID_DIM, OUT_DIM, NUM_CONVS)

    fwd = jax.jit(functools.partial(sag_network_forward,
                                    num_convs=NUM_CONVS,
                                    pool_ratio=POOL_RATIO,
                                    hid_dim=HID_DIM,
                                    out_dim=OUT_DIM))
    out = fwd(adj, feat, params)
    out = jax.block_until_ready(out)

    assert out.shape == (1, OUT_DIM)
    assert bool(jnp.all(jnp.isfinite(out)))
    # log_softmax rows should exponentiate-sum to ~1
    assert bool(jnp.allclose(jnp.sum(jnp.exp(out), axis=-1), 1.0, atol=1e-4))
    print("KERNEL_OK")
</pallas_src>

<mosaic_0001>
module attributes {stable_mosaic.version = 11 : i64} {
  func.func @_sag_fused_kernel(%arg0: memref<16x16xf32, #tpu.memory_space<vmem>>, %arg1: memref<16x8xf32, #tpu.memory_space<vmem>>, %arg2: memref<8x32xf32, #tpu.memory_space<vmem>>, %arg3: memref<1x32xf32, #tpu.memory_space<vmem>>, %arg4: memref<1x32xf32, #tpu.memory_space<vmem>>, %arg5: memref<1x1xf32, #tpu.memory_space<vmem>>, %arg6: memref<32x32xf32, #tpu.memory_space<vmem>>, %arg7: memref<1x32xf32, #tpu.memory_space<vmem>>, %arg8: memref<1x32xf32, #tpu.memory_space<vmem>>, %arg9: memref<1x1xf32, #tpu.memory_space<vmem>>, %arg10: memref<32x32xf32, #tpu.memory_space<vmem>>, %arg11: memref<1x32xf32, #tpu.memory_space<vmem>>, %arg12: memref<1x32xf32, #tpu.memory_space<vmem>>, %arg13: memref<1x1xf32, #tpu.memory_space<vmem>>, %arg14: memref<32x32xf32, #tpu.memory_space<vmem>>, %arg15: memref<32x32xf32, #tpu.memory_space<vmem>>, %arg16: memref<1x32xf32, #tpu.memory_space<vmem>>, %arg17: memref<32x16xf32, #tpu.memory_space<vmem>>, %arg18: memref<1x16xf32, #tpu.memory_space<vmem>>, %arg19: memref<16x128xf32, #tpu.memory_space<vmem>>, %arg20: memref<1x128xf32, #tpu.memory_space<vmem>>, %arg21: memref<1x128xf32, #tpu.memory_space<vmem>>) attributes {dimension_semantics = [], scalar_prefetch = 0 : i64, scratch_operands = 0 : i64, tpu.core_type = #tpu.core_type<tc>} {
    %c0 = arith.constant 0 : index
    %c0_0 = arith.constant 0 : index
    %0 = vector.load %arg0[%c0, %c0_0] : memref<16x16xf32, #tpu.memory_space<vmem>>, vector<16x16xf32>
    %1 = arith.truncf %0 : vector<16x16xf32> to vector<16x16xbf16>
    %c0_1 = arith.constant 0 : index
    %c0_2 = arith.constant 0 : index
    %2 = vector.load %arg1[%c0_1, %c0_2] : memref<16x8xf32, #tpu.memory_space<vmem>>, vector<16x8xf32>
    %3 = tpu.iota {dimensions = array<i32: 0>} : vector<16x1xi32>
    %4 = tpu.iota {dimensions = array<i32: 1>} : vector<1x16xi32>
    %5 = vector.broadcast %3 : vector<16x1xi32> to vector<16x16xi32>
    %6 = vector.broadcast %4 : vector<1x16xi32> to vector<16x16xi32>
    %7 = arith.cmpi eq, %5, %6 : vector<16x16xi32>
    %8 = arith.extui %7 : vector<16x16xi1> to vector<16x16xi32>
    %9 = arith.sitofp %8 : vector<16x16xi32> to vector<16x16xf32>
    %cst = arith.constant 1.000000e+00 : f32
    %10 = vector.broadcast %cst : f32 to vector<16x1xf32>
    %cst_3 = arith.constant 1.000000e+00 : f32
    %11 = vector.broadcast %cst_3 : f32 to vector<1x16xf32>
    %cst_4 = arith.constant 0.000000e+00 : f32
    %12 = vector.broadcast %cst_4 : f32 to vector<1x32xf32>
    %cst_5 = arith.constant 0.000000e+00 : f32
    %13 = vector.broadcast %cst_5 : f32 to vector<1x32xf32>
    %c0_6 = arith.constant 0 : index
    %c0_7 = arith.constant 0 : index
    %14 = vector.load %arg2[%c0_6, %c0_7] : memref<8x32xf32, #tpu.memory_space<vmem>>, vector<8x32xf32>
    %c0_8 = arith.constant 0 : index
    %c0_9 = arith.constant 0 : index
    %15 = vector.load %arg3[%c0_8, %c0_9] : memref<1x32xf32, #tpu.memory_space<vmem>>, vector<1x32xf32>
    %c0_10 = arith.constant 0 : index
    %c0_11 = arith.constant 0 : index
    %16 = vector.load %arg4[%c0_10, %c0_11] : memref<1x32xf32, #tpu.memory_space<vmem>>, vector<1x32xf32>
    %c0_12 = arith.constant 0 : index
    %c0_13 = arith.constant 0 : index
    %17 = vector.load %arg5[%c0_12, %c0_13] : memref<1x1xf32, #tpu.memory_space<vmem>>, vector<1x1xf32>
    %18 = vector.broadcast %11 : vector<1x16xf32> to vector<16x16xf32>
    %19 = arith.mulf %0, %18 : vector<16x16xf32>
    %cst_14 = arith.constant dense<0.000000e+00> : vector<16xf32>
    %20 = vector.multi_reduction <add>, %19, %cst_14 [1] : vector<16x16xf32> to vector<16xf32>
    %21 = vector.shape_cast %20 : vector<16xf32> to vector<16x1xf32>
    %cst_15 = arith.constant 1.000000e+00 : f32
    %22 = vector.broadcast %cst_15 : f32 to vector<16x1xf32>
    %23 = arith.maximumf %21, %22 : vector<16x1xf32>
    %24 = math.rsqrt %23 : vector<16x1xf32>
    %25 = vector.broadcast %10 : vector<16x1xf32> to vector<16x8xf32>
    %26 = arith.mulf %2, %25 : vector<16x8xf32>
    %27 = arith.truncf %26 : vector<16x8xf32> to vector<16x8xbf16>
    %28 = arith.truncf %14 : vector<8x32xf32> to vector<8x32xbf16>
    %cst_16 = arith.constant dense<0.000000e+00> : vector<16x32xf32>
    %29 = tpu.matmul %27, %28, %cst_16 {dimension_numbers = #tpu.dot_dimension_numbers<[1], [0], [0], [1], [0, 0, 1, 1], [], []>} : vector<16x8xbf16>, vector<8x32xbf16>, vector<16x32xf32> -> vector<16x32xf32>
    %30 = vector.broadcast %24 : vector<16x1xf32> to vector<16x32xf32>
    %31 = arith.mulf %30, %29 : vector<16x32xf32>
    %32 = arith.truncf %31 : vector<16x32xf32> to vector<16x32xbf16>
    %cst_17 = arith.constant dense<0.000000e+00> : vector<16x32xf32>
    %33 = tpu.matmul %1, %32, %cst_17 {dimension_numbers = #tpu.dot_dimension_numbers<[1], [0], [0], [1], [0, 0, 1, 1], [], []>} : vector<16x16xbf16>, vector<16x32xbf16>, vector<16x32xf32> -> vector<16x32xf32>
    %34 = vector.broadcast %24 : vector<16x1xf32> to vector<16x32xf32>
    %35 = arith.mulf %34, %33 : vector<16x32xf32>
    %36 = vector.broadcast %15 : vector<1x32xf32> to vector<16x32xf32>
    %37 = arith.addf %35, %36 : vector<16x32xf32>
    %cst_18 = arith.constant 0.000000e+00 : f32
    %38 = vector.broadcast %cst_18 : f32 to vector<16x32xf32>
    %39 = arith.maximumf %37, %38 : vector<16x32xf32>
    %40 = vector.broadcast %10 : vector<16x1xf32> to vector<16x32xf32>
    %41 = arith.mulf %39, %40 : vector<16x32xf32>
    %42 = vector.broadcast %24 : vector<16x1xf32> to vector<16x32xf32>
    %43 = arith.mulf %42, %41 : vector<16x32xf32>
    %44 = arith.truncf %43 : vector<16x32xf32> to vector<16x32xbf16>
    %cst_19 = arith.constant dense<0.000000e+00> : vector<16x32xf32>
    %45 = tpu.matmul %1, %44, %cst_19 {dimension_numbers = #tpu.dot_dimension_numbers<[1], [0], [0], [1], [0, 0, 1, 1], [], []>} : vector<16x16xbf16>, vector<16x32xbf16>, vector<16x32xf32> -> vector<16x32xf32>
    %46 = vector.broadcast %16 : vector<1x32xf32> to vector<16x32xf32>
    %47 = arith.mulf %45, %46 : vector<16x32xf32>
    %cst_20 = arith.constant dense<0.000000e+00> : vector<16xf32>
    %48 = vector.multi_reduction <add>, %47, %cst_20 [1] : vector<16x32xf32> to vector<16xf32>
    %49 = vector.shape_cast %48 : vector<16xf32> to vector<16x1xf32>
    %50 = arith.mulf %24, %49 : vector<16x1xf32>
    %51 = vector.broadcast %17 : vector<1x1xf32> to vector<16x1xf32>
    %52 = arith.addf %50, %51 : vector<16x1xf32>
    %53 = vector.broadcast %52 : vector<16x1xf32> to vector<16x16xf32>
    %54 = arith.mulf %53, %9 : vector<16x16xf32>
    %cst_21 = arith.constant dense<0.000000e+00> : vector<16xf32>
    %55 = vector.multi_reduction <add>, %54, %cst_21 [0] : vector<16x16xf32> to vector<16xf32>
    %56 = vector.shape_cast %55 : vector<16xf32> to vector<1x16xf32>
    %cst_22 = arith.constant 0.000000e+00 : f32
    %57 = vector.broadcast %cst_22 : f32 to vector<1x16xf32>
    %58 = arith.cmpf ogt, %11, %57 : vector<1x16xf32>
    %59 = vector.broadcast %56 : vector<1x16xf32> to vector<16x16xf32>
    %60 = vector.broadcast %52 : vector<16x1xf32> to vector<16x16xf32>
    %61 = arith.cmpf ogt, %59, %60 : vector<16x16xf32>
    %62 = vector.broadcast %56 : vector<1x16xf32> to vector<16x16xf32>
    %63 = vector.broadcast %52 : vector<16x1xf32> to vector<16x16xf32>
    %64 = arith.cmpf oeq, %62, %63 : vector<16x16xf32>
    %65 = vector.broadcast %4 : vector<1x16xi32> to vector<16x16xi32>
    %66 = vector.broadcast %3 : vector<16x1xi32> to vector<16x16xi32>
    %67 = arith.cmpi slt, %65, %66 : vector<16x16xi32>
    %68 = arith.andi %64, %67 : vector<16x16xi1>
    %69 = arith.ori %61, %68 : vector<16x16xi1>
    %70 = vector.broadcast %58 : vector<1x16xi1> to vector<16x16xi1>
    %71 = arith.andi %70, %69 : vector<16x16xi1>
    %cst_23 = arith.constant 1.000000e+00 : f32
    %cst_24 = arith.constant 0.000000e+00 : f32
    %72 = vector.broadcast %cst_23 : f32 to vector<16x16xf32>
    %73 = vector.broadcast %cst_24 : f32 to vector<16x16xf32>
    %74 = arith.select %71, %72, %73 : vector<16x16xi1>, vector<16x16xf32>
    %cst_25 = arith.constant dense<0.000000e+00> : vector<16xf32>
    %75 = vector.multi_reduction <add>, %74, %cst_25 [1] : vector<16x16xf32> to vector<16xf32>
    %76 = vector.shape_cast %75 : vector<16xf32> to vector<16x1xf32>
    %cst_26 = arith.constant 8.000000e+00 : f32
    %77 = vector.broadcast %cst_26 : f32 to vector<16x1xf32>
    %78 = arith.cmpf olt, %76, %77 : vector<16x1xf32>
    %cst_27 = arith.constant 0.000000e+00 : f32
    %79 = vector.broadcast %cst_27 : f32 to vector<16x1xf32>
    %80 = arith.cmpf ogt, %10, %79 : vector<16x1xf32>
    %81 = arith.andi %78, %80 : vector<16x1xi1>
    %cst_28 = arith.constant 1.000000e+00 : f32
    %cst_29 = arith.constant 0.000000e+00 : f32
    %82 = vector.broadcast %cst_28 : f32 to vector<16x1xf32>
    %83 = vector.broadcast %cst_29 : f32 to vector<16x1xf32>
    %84 = arith.select %81, %82, %83 : vector<16x1xi1>, vector<16x1xf32>
    %85 = vector.broadcast %84 : vector<16x1xf32> to vector<16x16xf32>
    %86 = arith.mulf %85, %9 : vector<16x16xf32>
    %cst_30 = arith.constant dense<0.000000e+00> : vector<16xf32>
    %87 = vector.multi_reduction <add>, %86, %cst_30 [0] : vector<16x16xf32> to vector<16xf32>
    %88 = vector.shape_cast %87 : vector<16xf32> to vector<1x16xf32>
    %89 = math.tanh %52 : vector<16x1xf32>
    %90 = vector.broadcast %89 : vector<16x1xf32> to vector<16x32xf32>
    %91 = arith.mulf %41, %90 : vector<16x32xf32>
    %92 = vector.broadcast %84 : vector<16x1xf32> to vector<16x32xf32>
    %93 = arith.mulf %91, %92 : vector<16x32xf32>
    %cst_31 = arith.constant dense<0.000000e+00> : vector<32xf32>
    %94 = vector.multi_reduction <add>, %93, %cst_31 [0] : vector<16x32xf32> to vector<32xf32>
    %95 = vector.shape_cast %94 : vector<32xf32> to vector<1x32xf32>
    %cst_32 = arith.constant 1.250000e-01 : f32
    %96 = vector.broadcast %cst_32 : f32 to vector<1x32xf32>
    %97 = arith.mulf %95, %96 : vector<1x32xf32>
    %98 = arith.addf %12, %97 : vector<1x32xf32>
    %cst_33 = arith.constant 0.000000e+00 : f32
    %99 = vector.broadcast %cst_33 : f32 to vector<16x1xf32>
    %100 = arith.cmpf ogt, %84, %99 : vector<16x1xf32>
    %cst_34 = arith.constant 0xFF800000 : f32
    %101 = vector.shape_cast %100 : vector<16x1xi1> to vector<16x1xi1>
    %102 = vector.broadcast %101 : vector<16x1xi1> to vector<16x32xi1>
    %103 = vector.broadcast %cst_34 : f32 to vector<16x32xf32>
    %104 = arith.select %102, %93, %103 : vector<16x32xi1>, vector<16x32xf32>
    %cst_35 = arith.constant dense<0xFF800000> : vector<32xf32>
    %105 = vector.multi_reduction <maximumf>, %104, %cst_35 [0] : vector<16x32xf32> to vector<32xf32>
    %106 = vector.shape_cast %105 : vector<32xf32> to vector<1x32xf32>
    %107 = arith.addf %13, %106 : vector<1x32xf32>
    %c0_36 = arith.constant 0 : index
    %c0_37 = arith.constant 0 : index
    %108 = vector.load %arg6[%c0_36, %c0_37] : memref<32x32xf32, #tpu.memory_space<vmem>>, vector<32x32xf32>
    %c0_38 = arith.constant 0 : index
    %c0_39 = arith.constant 0 : index
    %109 = vector.load %arg7[%c0_38, %c0_39] : memref<1x32xf32, #tpu.memory_space<vmem>>, vector<1x32xf32>
    %c0_40 = arith.constant 0 : index
    %c0_41 = arith.constant 0 : index
    %110 = vector.load %arg8[%c0_40, %c0_41] : memref<1x32xf32, #tpu.memory_space<vmem>>, vector<1x32xf32>
    %c0_42 = arith.constant 0 : index
    %c0_43 = arith.constant 0 : index
    %111 = vector.load %arg9[%c0_42, %c0_43] : memref<1x1xf32, #tpu.memory_space<vmem>>, vector<1x1xf32>
    %112 = vector.broadcast %88 : vector<1x16xf32> to vector<16x16xf32>
    %113 = arith.mulf %0, %112 : vector<16x16xf32>
    %cst_44 = arith.constant dense<0.000000e+00> : vector<16xf32>
    %114 = vector.multi_reduction <add>, %113, %cst_44 [1] : vector<16x16xf32> to vector<16xf32>
    %115 = vector.shape_cast %114 : vector<16xf32> to vector<16x1xf32>
    %cst_45 = arith.constant 1.000000e+00 : f32
    %116 = vector.broadcast %cst_45 : f32 to vector<16x1xf32>
    %117 = arith.maximumf %115, %116 : vector<16x1xf32>
    %118 = math.rsqrt %117 : vector<16x1xf32>
    %119 = vector.broadcast %84 : vector<16x1xf32> to vector<16x32xf32>
    %120 = arith.mulf %93, %119 : vector<16x32xf32>
    %121 = arith.truncf %120 : vector<16x32xf32> to vector<16x32xbf16>
    %122 = arith.truncf %108 : vector<32x32xf32> to vector<32x32xbf16>
    %cst_46 = arith.constant dense<0.000000e+00> : vector<16x32xf32>
    %123 = tpu.matmul %121, %122, %cst_46 {dimension_numbers = #tpu.dot_dimension_numbers<[1], [0], [0], [1], [0, 0, 1, 1], [], []>} : vector<16x32xbf16>, vector<32x32xbf16>, vector<16x32xf32> -> vector<16x32xf32>
    %124 = vector.broadcast %118 : vector<16x1xf32> to vector<16x32xf32>
    %125 = arith.mulf %124, %123 : vector<16x32xf32>
    %126 = arith.truncf %125 : vector<16x32xf32> to vector<16x32xbf16>
    %cst_47 = arith.constant dense<0.000000e+00> : vector<16x32xf32>
    %127 = tpu.matmul %1, %126, %cst_47 {dimension_numbers = #tpu.dot_dimension_numbers<[1], [0], [0], [1], [0, 0, 1, 1], [], []>} : vector<16x16xbf16>, vector<16x32xbf16>, vector<16x32xf32> -> vector<16x32xf32>
    %128 = vector.broadcast %118 : vector<16x1xf32> to vector<16x32xf32>
    %129 = arith.mulf %128, %127 : vector<16x32xf32>
    %130 = vector.broadcast %109 : vector<1x32xf32> to vector<16x32xf32>
    %131 = arith.addf %129, %130 : vector<16x32xf32>
    %cst_48 = arith.constant 0.000000e+00 : f32
    %132 = vector.broadcast %cst_48 : f32 to vector<16x32xf32>
    %133 = arith.maximumf %131, %132 : vector<16x32xf32>
    %134 = vector.broadcast %84 : vector<16x1xf32> to vector<16x32xf32>
    %135 = arith.mulf %133, %134 : vector<16x32xf32>
    %136 = vector.broadcast %118 : vector<16x1xf32> to vector<16x32xf32>
    %137 = arith.mulf %136, %135 : vector<16x32xf32>
    %138 = arith.truncf %137 : vector<16x32xf32> to vector<16x32xbf16>
    %cst_49 = arith.constant dense<0.000000e+00> : vector<16x32xf32>
    %139 = tpu.matmul %1, %138, %cst_49 {dimension_numbers = #tpu.dot_dimension_numbers<[1], [0], [0], [1], [0, 0, 1, 1], [], []>} : vector<16x16xbf16>, vector<16x32xbf16>, vector<16x32xf32> -> vector<16x32xf32>
    %140 = vector.broadcast %110 : vector<1x32xf32> to vector<16x32xf32>
    %141 = arith.mulf %139, %140 : vector<16x32xf32>
    %cst_50 = arith.constant dense<0.000000e+00> : vector<16xf32>
    %142 = vector.multi_reduction <add>, %141, %cst_50 [1] : vector<16x32xf32> to vector<16xf32>
    %143 = vector.shape_cast %142 : vector<16xf32> to vector<16x1xf32>
    %144 = arith.mulf %118, %143 : vector<16x1xf32>
    %145 = vector.broadcast %111 : vector<1x1xf32> to vector<16x1xf32>
    %146 = arith.addf %144, %145 : vector<16x1xf32>
    %147 = vector.broadcast %146 : vector<16x1xf32> to vector<16x16xf32>
    %148 = arith.mulf %147, %9 : vector<16x16xf32>
    %cst_51 = arith.constant dense<0.000000e+00> : vector<16xf32>
    %149 = vector.multi_reduction <add>, %148, %cst_51 [0] : vector<16x16xf32> to vector<16xf32>
    %150 = vector.shape_cast %149 : vector<16xf32> to vector<1x16xf32>
    %cst_52 = arith.constant 0.000000e+00 : f32
    %151 = vector.broadcast %cst_52 : f32 to vector<1x16xf32>
    %152 = arith.cmpf ogt, %88, %151 : vector<1x16xf32>
    %153 = vector.broadcast %150 : vector<1x16xf32> to vector<16x16xf32>
    %154 = vector.broadcast %146 : vector<16x1xf32> to vector<16x16xf32>
    %155 = arith.cmpf ogt, %153, %154 : vector<16x16xf32>
    %156 = vector.broadcast %150 : vector<1x16xf32> to vector<16x16xf32>
    %157 = vector.broadcast %146 : vector<16x1xf32> to vector<16x16xf32>
    %158 = arith.cmpf oeq, %156, %157 : vector<16x16xf32>
    %159 = vector.broadcast %4 : vector<1x16xi32> to vector<16x16xi32>
    %160 = vector.broadcast %3 : vector<16x1xi32> to vector<16x16xi32>
    %161 = arith.cmpi slt, %159, %160 : vector<16x16xi32>
    %162 = arith.andi %158, %161 : vector<16x16xi1>
    %163 = arith.ori %155, %162 : vector<16x16xi1>
    %164 = vector.broadcast %152 : vector<1x16xi1> to vector<16x16xi1>
    %165 = arith.andi %164, %163 : vector<16x16xi1>
    %cst_53 = arith.constant 1.000000e+00 : f32
    %cst_54 = arith.constant 0.000000e+00 : f32
    %166 = vector.broadcast %cst_53 : f32 to vector<16x16xf32>
    %167 = vector.broadcast %cst_54 : f32 to vector<16x16xf32>
    %168 = arith.select %165, %166, %167 : vector<16x16xi1>, vector<16x16xf32>
    %cst_55 = arith.constant dense<0.000000e+00> : vector<16xf32>
    %169 = vector.multi_reduction <add>, %168, %cst_55 [1] : vector<16x16xf32> to vector<16xf32>
    %170 = vector.shape_cast %169 : vector<16xf32> to vector<16x1xf32>
    %cst_56 = arith.constant 4.000000e+00 : f32
    %171 = vector.broadcast %cst_56 : f32 to vector<16x1xf32>
    %172 = arith.cmpf olt, %170, %171 : vector<16x1xf32>
    %cst_57 = arith.constant 0.000000e+00 : f32
    %173 = vector.broadcast %cst_57 : f32 to vector<16x1xf32>
    %174 = arith.cmpf ogt, %84, %173 : vector<16x1xf32>
    %175 = arith.andi %172, %174 : vector<16x1xi1>
    %cst_58 = arith.constant 1.000000e+00 : f32
    %cst_59 = arith.constant 0.000000e+00 : f32
    %176 = vector.broadcast %cst_58 : f32 to vector<16x1xf32>
    %177 = vector.broadcast %cst_59 : f32 to vector<16x1xf32>
    %178 = arith.select %175, %176, %177 : vector<16x1xi1>, vector<16x1xf32>
    %179 = vector.broadcast %178 : vector<16x1xf32> to vector<16x16xf32>
    %180 = arith.mulf %179, %9 : vector<16x16xf32>
    %cst_60 = arith.constant dense<0.000000e+00> : vector<16xf32>
    %181 = vector.multi_reduction <add>, %180, %cst_60 [0] : vector<16x16xf32> to vector<16xf32>
    %182 = vector.shape_cast %181 : vector<16xf32> to vector<1x16xf32>
    %183 = math.tanh %146 : vector<16x1xf32>
    %184 = vector.broadcast %183 : vector<16x1xf32> to vector<16x32xf32>
    %185 = arith.mulf %135, %184 : vector<16x32xf32>
    %186 = vector.broadcast %178 : vector<16x1xf32> to vector<16x32xf32>
    %187 = arith.mulf %185, %186 : vector<16x32xf32>
    %cst_61 = arith.constant dense<0.000000e+00> : vector<32xf32>
    %188 = vector.multi_reduction <add>, %187, %cst_61 [0] : vector<16x32xf32> to vector<32xf32>
    %189 = vector.shape_cast %188 : vector<32xf32> to vector<1x32xf32>
    %cst_62 = arith.constant 2.500000e-01 : f32
    %190 = vector.broadcast %cst_62 : f32 to vector<1x32xf32>
    %191 = arith.mulf %189, %190 : vector<1x32xf32>
    %192 = arith.addf %98, %191 : vector<1x32xf32>
    %cst_63 = arith.constant 0.000000e+00 : f32
    %193 = vector.broadcast %cst_63 : f32 to vector<16x1xf32>
    %194 = arith.cmpf ogt, %178, %193 : vector<16x1xf32>
    %cst_64 = arith.constant 0xFF800000 : f32
    %195 = vector.shape_cast %194 : vector<16x1xi1> to vector<16x1xi1>
    %196 = vector.broadcast %195 : vector<16x1xi1> to vector<16x32xi1>
    %197 = vector.broadcast %cst_64 : f32 to vector<16x32xf32>
    %198 = arith.select %196, %187, %197 : vector<16x32xi1>, vector<16x32xf32>
    %cst_65 = arith.constant dense<0xFF800000> : vector<32xf32>
    %199 = vector.multi_reduction <maximumf>, %198, %cst_65 [0] : vector<16x32xf32> to vector<32xf32>
    %200 = vector.shape_cast %199 : vector<32xf32> to vector<1x32xf32>
    %201 = arith.addf %107, %200 : vector<1x32xf32>
    %c0_66 = arith.constant 0 : index
    %c0_67 = arith.constant 0 : index
    %202 = vector.load %arg10[%c0_66, %c0_67] : memref<32x32xf32, #tpu.memory_space<vmem>>, vector<32x32xf32>
    %c0_68 = arith.constant 0 : index
    %c0_69 = arith.constant 0 : index
    %203 = vector.load %arg11[%c0_68, %c0_69] : memref<1x32xf32, #tpu.memory_space<vmem>>, vector<1x32xf32>
    %c0_70 = arith.constant 0 : index
    %c0_71 = arith.constant 0 : index
    %204 = vector.load %arg12[%c0_70, %c0_71] : memref<1x32xf32, #tpu.memory_space<vmem>>, vector<1x32xf32>
    %c0_72 = arith.constant 0 : index
    %c0_73 = arith.constant 0 : index
    %205 = vector.load %arg13[%c0_72, %c0_73] : memref<1x1xf32, #tpu.memory_space<vmem>>, vector<1x1xf32>
    %206 = vector.broadcast %182 : vector<1x16xf32> to vector<16x16xf32>
    %207 = arith.mulf %0, %206 : vector<16x16xf32>
    %cst_74 = arith.constant dense<0.000000e+00> : vector<16xf32>
    %208 = vector.multi_reduction <add>, %207, %cst_74 [1] : vector<16x16xf32> to vector<16xf32>
    %209 = vector.shape_cast %208 : vector<16xf32> to vector<16x1xf32>
    %cst_75 = arith.constant 1.000000e+00 : f32
    %210 = vector.broadcast %cst_75 : f32 to vector<16x1xf32>
    %211 = arith.maximumf %209, %210 : vector<16x1xf32>
    %212 = math.rsqrt %211 : vector<16x1xf32>
    %213 = vector.broadcast %178 : vector<16x1xf32> to vector<16x32xf32>
    %214 = arith.mulf %187, %213 : vector<16x32xf32>
    %215 = arith.truncf %214 : vector<16x32xf32> to vector<16x32xbf16>
    %216 = arith.truncf %202 : vector<32x32xf32> to vector<32x32xbf16>
    %cst_76 = arith.constant dense<0.000000e+00> : vector<16x32xf32>
    %217 = tpu.matmul %215, %216, %cst_76 {dimension_numbers = #tpu.dot_dimension_numbers<[1], [0], [0], [1], [0, 0, 1, 1], [], []>} : vector<16x32xbf16>, vector<32x32xbf16>, vector<16x32xf32> -> vector<16x32xf32>
    %218 = vector.broadcast %212 : vector<16x1xf32> to vector<16x32xf32>
    %219 = arith.mulf %218, %217 : vector<16x32xf32>
    %220 = arith.truncf %219 : vector<16x32xf32> to vector<16x32xbf16>
    %cst_77 = arith.constant dense<0.000000e+00> : vector<16x32xf32>
    %221 = tpu.matmul %1, %220, %cst_77 {dimension_numbers = #tpu.dot_dimension_numbers<[1], [0], [0], [1], [0, 0, 1, 1], [], []>} : vector<16x16xbf16>, vector<16x32xbf16>, vector<16x32xf32> -> vector<16x32xf32>
    %222 = vector.broadcast %212 : vector<16x1xf32> to vector<16x32xf32>
    %223 = arith.mulf %222, %221 : vector<16x32xf32>
    %224 = vector.broadcast %203 : vector<1x32xf32> to vector<16x32xf32>
    %225 = arith.addf %223, %224 : vector<16x32xf32>
    %cst_78 = arith.constant 0.000000e+00 : f32
    %226 = vector.broadcast %cst_78 : f32 to vector<16x32xf32>
    %227 = arith.maximumf %225, %226 : vector<16x32xf32>
    %228 = vector.broadcast %178 : vector<16x1xf32> to vector<16x32xf32>
    %229 = arith.mulf %227, %228 : vector<16x32xf32>
    %230 = vector.broadcast %212 : vector<16x1xf32> to vector<16x32xf32>
    %231 = arith.mulf %230, %229 : vector<16x32xf32>
    %232 = arith.truncf %231 : vector<16x32xf32> to vector<16x32xbf16>
    %cst_79 = arith.constant dense<0.000000e+00> : vector<16x32xf32>
    %233 = tpu.matmul %1, %232, %cst_79 {dimension_numbers = #tpu.dot_dimension_numbers<[1], [0], [0], [1], [0, 0, 1, 1], [], []>} : vector<16x16xbf16>, vector<16x32xbf16>, vector<16x32xf32> -> vector<16x32xf32>
    %234 = vector.broadcast %204 : vector<1x32xf32> to vector<16x32xf32>
    %235 = arith.mulf %233, %234 : vector<16x32xf32>
    %cst_80 = arith.constant dense<0.000000e+00> : vector<16xf32>
    %236 = vector.multi_reduction <add>, %235, %cst_80 [1] : vector<16x32xf32> to vector<16xf32>
    %237 = vector.shape_cast %236 : vector<16xf32> to vector<16x1xf32>
    %238 = arith.mulf %212, %237 : vector<16x1xf32>
    %239 = vector.broadcast %205 : vector<1x1xf32> to vector<16x1xf32>
    %240 = arith.addf %238, %239 : vector<16x1xf32>
    %241 = vector.broadcast %240 : vector<16x1xf32> to vector<16x16xf32>
    %242 = arith.mulf %241, %9 : vector<16x16xf32>
    %cst_81 = arith.constant dense<0.000000e+00> : vector<16xf32>
    %243 = vector.multi_reduction <add>, %242, %cst_81 [0] : vector<16x16xf32> to vector<16xf32>
    %244 = vector.shape_cast %243 : vector<16xf32> to vector<1x16xf32>
    %cst_82 = arith.constant 0.000000e+00 : f32
    %245 = vector.broadcast %cst_82 : f32 to vector<1x16xf32>
    %246 = arith.cmpf ogt, %182, %245 : vector<1x16xf32>
    %247 = vector.broadcast %244 : vector<1x16xf32> to vector<16x16xf32>
    %248 = vector.broadcast %240 : vector<16x1xf32> to vector<16x16xf32>
    %249 = arith.cmpf ogt, %247, %248 : vector<16x16xf32>
    %250 = vector.broadcast %244 : vector<1x16xf32> to vector<16x16xf32>
    %251 = vector.broadcast %240 : vector<16x1xf32> to vector<16x16xf32>
    %252 = arith.cmpf oeq, %250, %251 : vector<16x16xf32>
    %253 = vector.broadcast %4 : vector<1x16xi32> to vector<16x16xi32>
    %254 = vector.broadcast %3 : vector<16x1xi32> to vector<16x16xi32>
    %255 = arith.cmpi slt, %253, %254 : vector<16x16xi32>
    %256 = arith.andi %252, %255 : vector<16x16xi1>
    %257 = arith.ori %249, %256 : vector<16x16xi1>
    %258 = vector.broadcast %246 : vector<1x16xi1> to vector<16x16xi1>
    %259 = arith.andi %258, %257 : vector<16x16xi1>
    %cst_83 = arith.constant 1.000000e+00 : f32
    %cst_84 = arith.constant 0.000000e+00 : f32
    %260 = vector.broadcast %cst_83 : f32 to vector<16x16xf32>
    %261 = vector.broadcast %cst_84 : f32 to vector<16x16xf32>
    %262 = arith.select %259, %260, %261 : vector<16x16xi1>, vector<16x16xf32>
    %cst_85 = arith.constant dense<0.000000e+00> : vector<16xf32>
    %263 = vector.multi_reduction <add>, %262, %cst_85 [1] : vector<16x16xf32> to vector<16xf32>
    %264 = vector.shape_cast %263 : vector<16xf32> to vector<16x1xf32>
    %cst_86 = arith.constant 2.000000e+00 : f32
    %265 = vector.broadcast %cst_86 : f32 to vector<16x1xf32>
    %266 = arith.cmpf olt, %264, %265 : vector<16x1xf32>
    %cst_87 = arith.constant 0.000000e+00 : f32
    %267 = vector.broadcast %cst_87 : f32 to vector<16x1xf32>
    %268 = arith.cmpf ogt, %178, %267 : vector<16x1xf32>
    %269 = arith.andi %266, %268 : vector<16x1xi1>
    %cst_88 = arith.constant 1.000000e+00 : f32
    %cst_89 = arith.constant 0.000000e+00 : f32
    %270 = vector.broadcast %cst_88 : f32 to vector<16x1xf32>
    %271 = vector.broadcast %cst_89 : f32 to vector<16x1xf32>
    %272 = arith.select %269, %270, %271 : vector<16x1xi1>, vector<16x1xf32>
    %273 = math.tanh %240 : vector<16x1xf32>
    %274 = vector.broadcast %273 : vector<16x1xf32> to vector<16x32xf32>
    %275 = arith.mulf %229, %274 : vector<16x32xf32>
    %276 = vector.broadcast %272 : vector<16x1xf32> to vector<16x32xf32>
    %277 = arith.mulf %275, %276 : vector<16x32xf32>
    %cst_90 = arith.constant dense<0.000000e+00> : vector<32xf32>
    %278 = vector.multi_reduction <add>, %277, %cst_90 [0] : vector<16x32xf32> to vector<32xf32>
    %279 = vector.shape_cast %278 : vector<32xf32> to vector<1x32xf32>
    %cst_91 = arith.constant 5.000000e-01 : f32
    %280 = vector.broadcast %cst_91 : f32 to vector<1x32xf32>
    %281 = arith.mulf %279, %280 : vector<1x32xf32>
    %282 = arith.addf %192, %281 : vector<1x32xf32>
    %cst_92 = arith.constant 0.000000e+00 : f32
    %283 = vector.broadcast %cst_92 : f32 to vector<16x1xf32>
    %284 = arith.cmpf ogt, %272, %283 : vector<16x1xf32>
    %cst_93 = arith.constant 0xFF800000 : f32
    %285 = vector.shape_cast %284 : vector<16x1xi1> to vector<16x1xi1>
    %286 = vector.broadcast %285 : vector<16x1xi1> to vector<16x32xi1>
    %287 = vector.broadcast %cst_93 : f32 to vector<16x32xf32>
    %288 = arith.select %286, %277, %287 : vector<16x32xi1>, vector<16x32xf32>
    %cst_94 = arith.constant dense<0xFF800000> : vector<32xf32>
    %289 = vector.multi_reduction <maximumf>, %288, %cst_94 [0] : vector<16x32xf32> to vector<32xf32>
    %290 = vector.shape_cast %289 : vector<32xf32> to vector<1x32xf32>
    %291 = arith.addf %201, %290 : vector<1x32xf32>
    %292 = arith.truncf %282 : vector<1x32xf32> to vector<1x32xbf16>
    %c0_95 = arith.constant 0 : index
    %c0_96 = arith.constant 0 : index
    %293 = vector.load %arg14[%c0_95, %c0_96] : memref<32x32xf32, #tpu.memory_space<vmem>>, vector<32x32xf32>
    %294 = arith.truncf %293 : vector<32x32xf32> to vector<32x32xbf16>
    %cst_97 = arith.constant dense<0.000000e+00> : vector<1x32xf32>
    %295 = tpu.matmul %292, %294, %cst_97 {dimension_numbers = #tpu.dot_dimension_numbers<[1], [0], [0], [1], [0, 0, 1, 1], [], []>} : vector<1x32xbf16>, vector<32x32xbf16>, vector<1x32xf32> -> vector<1x32xf32>
    %296 = arith.truncf %291 : vector<1x32xf32> to vector<1x32xbf16>
    %c0_98 = arith.constant 0 : index
    %c0_99 = arith.constant 0 : index
    %297 = vector.load %arg15[%c0_98, %c0_99] : memref<32x32xf32, #tpu.memory_space<vmem>>, vector<32x32xf32>
    %298 = arith.truncf %297 : vector<32x32xf32> to vector<32x32xbf16>
    %cst_100 = arith.constant dense<0.000000e+00> : vector<1x32xf32>
    %299 = tpu.matmul %296, %298, %cst_100 {dimension_numbers = #tpu.dot_dimension_numbers<[1], [0], [0], [1], [0, 0, 1, 1], [], []>} : vector<1x32xbf16>, vector<32x32xbf16>, vector<1x32xf32> -> vector<1x32xf32>
    %300 = arith.addf %295, %299 : vector<1x32xf32>
    %c0_101 = arith.constant 0 : index
    %c0_102 = arith.constant 0 : index
    %301 = vector.load %arg16[%c0_101, %c0_102] : memref<1x32xf32, #tpu.memory_space<vmem>>, vector<1x32xf32>
    %302 = arith.addf %300, %301 : vector<1x32xf32>
    %cst_103 = arith.constant 0.000000e+00 : f32
    %303 = vector.broadcast %cst_103 : f32 to vector<1x32xf32>
    %304 = arith.maximumf %302, %303 : vector<1x32xf32>
    %305 = arith.truncf %304 : vector<1x32xf32> to vector<1x32xbf16>
    %c0_104 = arith.constant 0 : index
    %c0_105 = arith.constant 0 : index
    %306 = vector.load %arg17[%c0_104, %c0_105] : memref<32x16xf32, #tpu.memory_space<vmem>>, vector<32x16xf32>
    %307 = arith.truncf %306 : vector<32x16xf32> to vector<32x16xbf16>
    %cst_106 = arith.constant dense<0.000000e+00> : vector<1x16xf32>
    %308 = tpu.matmul %305, %307, %cst_106 {dimension_numbers = #tpu.dot_dimension_numbers<[1], [0], [0], [1], [0, 0, 1, 1], [], []>} : vector<1x32xbf16>, vector<32x16xbf16>, vector<1x16xf32> -> vector<1x16xf32>
    %c0_107 = arith.constant 0 : index
    %c0_108 = arith.constant 0 : index
    %309 = vector.load %arg18[%c0_107, %c0_108] : memref<1x16xf32, #tpu.memory_space<vmem>>, vector<1x16xf32>
    %310 = arith.addf %308, %309 : vector<1x16xf32>
    %cst_109 = arith.constant 0.000000e+00 : f32
    %311 = vector.broadcast %cst_109 : f32 to vector<1x16xf32>
    %312 = arith.maximumf %310, %311 : vector<1x16xf32>
    %313 = arith.truncf %312 : vector<1x16xf32> to vector<1x16xbf16>
    %c0_110 = arith.constant 0 : index
    %c0_111 = arith.constant 0 : index
    %314 = vector.load %arg19[%c0_110, %c0_111] : memref<16x128xf32, #tpu.memory_space<vmem>>, vector<16x128xf32>
    %315 = arith.truncf %314 : vector<16x128xf32> to vector<16x128xbf16>
    %cst_112 = arith.constant dense<0.000000e+00> : vector<1x128xf32>
    %316 = tpu.matmul %313, %315, %cst_112 {dimension_numbers = #tpu.dot_dimension_numbers<[1], [0], [0], [1], [0, 0, 1, 1], [], []>} : vector<1x16xbf16>, vector<16x128xbf16>, vector<1x128xf32> -> vector<1x128xf32>
    %c0_113 = arith.constant 0 : index
    %c0_114 = arith.constant 0 : index
    %317 = vector.load %arg20[%c0_113, %c0_114] : memref<1x128xf32, #tpu.memory_space<vmem>>, vector<1x128xf32>
    %318 = arith.addf %316, %317 : vector<1x128xf32>
    %cst_115 = arith.constant dense<0xFF800000> : vector<1xf32>
    %319 = vector.multi_reduction <maximumf>, %318, %cst_115 [1] : vector<1x128xf32> to vector<1xf32>
    %320 = vector.shape_cast %319 : vector<1xf32> to vector<1x1xf32>
    %321 = vector.broadcast %320 : vector<1x1xf32> to vector<1x128xf32>
    %322 = arith.subf %318, %321 : vector<1x128xf32>
    %323 = math.exp %322 : vector<1x128xf32>
    %cst_116 = arith.constant dense<0.000000e+00> : vector<1xf32>
    %324 = vector.multi_reduction <add>, %323, %cst_116 [1] : vector<1x128xf32> to vector<1xf32>
    %325 = vector.shape_cast %324 : vector<1xf32> to vector<1x1xf32>
    %326 = math.log %325 : vector<1x1xf32>
    %327 = vector.broadcast %326 : vector<1x1xf32> to vector<1x128xf32>
    %328 = arith.subf %322, %327 : vector<1x128xf32>
    %c0_117 = arith.constant 0 : index
    %c0_118 = arith.constant 0 : index
    %329 = vector.load %arg21[%c0_117, %c0_118] : memref<1x128xf32, #tpu.memory_space<vmem>>, vector<1x128xf32>
    tpu.vector_store %arg21[%c0_117, %c0_118], %328 {strides = array<i32>} : memref<1x128xf32, #tpu.memory_space<vmem>>, vector<1x128xf32>,
    return
  }
}

</mosaic_0001>

<llo_original>
// kernel: sag_network_forward.1
$region0: #{sag_network_forward.1}
  #allocation0 [shape = 'u32[]', space=smem, size = 0x4, offset = 0x4, fixed_abs, tag = 'smem constant byte address 0x4 - core index']
  #allocation1 [shape = 'u32[144,128]{1,0:T(1,128)}', space=vmem, size = 0x12000, scoped, tag = 'internal scratch']
  #allocation2 [shape = 'f32[1,1]{1,0:T(1,128)S(1)}', space=vmem, size = 0x200, scoped, tag = 'scoped memory for sag_network_forward.1']
  #allocation3 [shape = 'f32[1,1]{1,0:T(1,128)S(1)}', space=vmem, size = 0x200, scoped, tag = 'scoped memory for sag_network_forward.1']
  #allocation4 [shape = 'f32[1,1]{1,0:T(1,128)S(1)}', space=vmem, size = 0x200, scoped, tag = 'scoped memory for sag_network_forward.1']
  %s0 = inlined_call_operand.hbm [shape: f32[16,16], index: 0, kind: input, shape index: {}]
  %s1 = inlined_call_operand.vmem [shape: f32[16,8], index: 1, kind: input, shape index: {}]
  %s2 = inlined_call_operand.hbm [shape: f32[8,32], index: 2, kind: input, shape index: {}]
  %s3 = inlined_call_operand.hbm [shape: f32[1,32], index: 3, kind: input, shape index: {}]
  %s4 = inlined_call_operand.hbm [shape: f32[1,32], index: 4, kind: input, shape index: {}]
  %s5 = inlined_call_operand.<no memory space> [shape: f32[1,1], index: 5, kind: input, shape index: {}]
  %s6 = inlined_call_operand.vmem [shape: f32[32,32], index: 6, kind: input, shape index: {}]
  %s7 = inlined_call_operand.hbm [shape: f32[1,32], index: 7, kind: input, shape index: {}]
  %s8 = inlined_call_operand.hbm [shape: f32[1,32], index: 8, kind: input, shape index: {}]
  %s9 = inlined_call_operand.<no memory space> [shape: f32[1,1], index: 9, kind: input, shape index: {}]
  %s10 = inlined_call_operand.vmem [shape: f32[32,32], index: 10, kind: input, shape index: {}]
  %s11 = inlined_call_operand.hbm [shape: f32[1,32], index: 11, kind: input, shape index: {}]
  %s12 = inlined_call_operand.hbm [shape: f32[1,32], index: 12, kind: input, shape index: {}]
  %s13 = inlined_call_operand.<no memory space> [shape: f32[1,1], index: 13, kind: input, shape index: {}]
  %s14 = inlined_call_operand.vmem [shape: f32[32,32], index: 14, kind: input, shape index: {}]
  %s15 = inlined_call_operand.hbm [shape: f32[32,32], index: 15, kind: input, shape index: {}]
  %s16 = inlined_call_operand.vmem [shape: f32[1,32], index: 16, kind: input, shape index: {}]
  %s17 = inlined_call_operand.vmem [shape: f32[32,16], index: 17, kind: input, shape index: {}]
  %s18 = inlined_call_operand.vmem [shape: f32[1,16], index: 18, kind: input, shape index: {}]
  %s19 = inlined_call_operand.hbm [shape: f32[16,128], index: 19, kind: input, shape index: {}]
  %s20 = inlined_call_operand.vmem [shape: f32[1,128], index: 20, kind: input, shape index: {}]
  %s21 = inlined_call_operand.hbm [shape: f32[1,128], index: 21, kind: output, shape index: {}]
  %s22 = sld [smem:[#allocation0]]
  $region134: #{sag_network_forward.1} parent=0
    _
  %s24 = ssub.s32 1, %s22
  %s25 = scalar_select 0, %s24, %s22
  %v26 = vstv %s5
  %27 = vst [vmem:[#allocation2] sm:$0x1] %v26
  %v28 = vstv %s9
  %29 = vst [vmem:[#allocation3] sm:$0x1] %v28
  %v30 = vstv %s13
  %31 = vst [vmem:[#allocation4] sm:$0x1] %v30
  $region1: #{sag_network_forward.1} parent=0
    #allocation5 [shape = 'u8[8192]{0}', space=vmem, size = 0x2000, scoped, tag = 'input window, operand 0, single buffered']
    #allocation6 [shape = 's32[1]{0}', space=sflag, size = 0x4, scoped, tag = 'scoped memory for sag_network_forward.1']
    #allocation7 [shape = 's32[1]{0}', space=sflag, size = 0x4, scoped, tag = 'scoped memory for sag_network_forward.1']
    #allocation8 [shape = 'u8[4096]{0}', space=vmem, size = 0x1000, scoped, tag = 'input window, operand 2, single buffered']
    #allocation9 [shape = 's32[1]{0}', space=sflag, size = 0x4, scoped, tag = 'scoped memory for sag_network_forward.1']
    #allocation10 [shape = 'u8[512]{0}', space=vmem, size = 0x400, scoped, tag = 'input window, operand 3, single buffered']
    #allocation11 [shape = 'u8[512]{0}', space=vmem, size = 0x400, scoped, tag = 'input window, operand 4, single buffered']
    #allocation12 [shape = 's32[1]{0}', space=sflag, size = 0x4, scoped, tag = 'scoped memory for sag_network_forward.1']
    #allocation13 [shape = 'u8[512]{0}', space=vmem, size = 0x400, scoped, tag = 'input window, operand 7, single buffered']
    #allocation14 [shape = 'u8[512]{0}', space=vmem, size = 0x400, scoped, tag = 'input window, operand 8, single buffered']
    #allocation15 [shape = 's32[1]{0}', space=sflag, size = 0x4, scoped, tag = 'scoped memory for sag_network_forward.1']
    #allocation16 [shape = 'u8[512]{0}', space=vmem, size = 0x400, scoped, tag = 'input window, operand 11, single buffered']
    #allocation17 [shape = 'u8[512]{0}', space=vmem, size = 0x400, scoped, tag = 'input window, operand 12, single buffered']
    #allocation18 [shape = 's32[1]{0}', space=sflag, size = 0x4, scoped, tag = 'scoped memory for sag_network_forward.1']
    #allocation19 [shape = 'u8[16384]{0}', space=vmem, size = 0x4000, scoped, tag = 'input window, operand 15, single buffered']
    #allocation20 [shape = 'u8[8192]{0}', space=vmem, size = 0x2000, scoped, tag = 'input window, operand 19, single buffered']
    #allocation21 [shape = 's32[1]{0}', space=sflag, size = 0x4, scoped, tag = 'scoped memory for sag_network_forward.1']
    #allocation22 [shape = 'u8[512]{0}', space=vmem, size = 0x400, scoped, tag = 'output window, operand 0, single buffered']
    %32 = vsyncpa [#allocation6], 0
    %33 = vsyncpa [#allocation9], 0
    %34 = vsyncpa [#allocation12], 0
    %35 = vsyncpa [#allocation15], 0
    %36 = vsyncpa [#allocation18], 0
    %37 = vsyncpa [#allocation21], 0
    %38 = vsyncpa [#allocation7], 0
    // Predicated region
    $region2: #{sag_network_forward.1} parent=1 // pred_check
      _
    $region3: #{sag_network_forward.1} parent=1 // pred_check_branch
      %40 = sbr.rel (0) target = $region5
    $region4: #{sag_network_forward.1} parent=1 // pred_region
      %s42 = ssub.s32 256, 256
      %43 = vsyncadd [#allocation6], %s42
      %s44 = sshll.u32 [#allocation5], 4
      %s45 = int_to_ptr.vmem [resolvable:$true] %s44
      %50 = dma.hbm_to_vmem [thread:$0]  %s0, 256, %s45, [#allocation6], 128, 128, 8
    $region5: #{sag_network_forward.1} parent=1 // pred_fallthru
      _
    // Predicated region
    $region6: #{sag_network_forward.1} parent=1 // pred_check
      _
    $region7: #{sag_network_forward.1} parent=1 // pred_check_branch
      %52 = sbr.rel (0) target = $region9
    $region8: #{sag_network_forward.1} parent=1 // pred_region
      _
    $region9: #{sag_network_forward.1} parent=1 // pred_fallthru
      _
    // Predicated region
    $region10: #{sag_network_forward.1} parent=1 // pred_check
      _
    $region11: #{sag_network_forward.1} parent=1 // pred_check_branch
      %54 = sbr.rel (0) target = $region13
    $region12: #{sag_network_forward.1} parent=1 // pred_region
      %s56 = ssub.s32 128, 128
      %57 = vsyncadd [#allocation9], %s56
      %s59 = sshll.u32 [#allocation8], 4
      %s60 = int_to_ptr.vmem [resolvable:$true] %s59
      %62 = dma.hbm_to_vmem [thread:$0]  %s2, 128, %s60, [#allocation9]
    $region13: #{sag_network_forward.1} parent=1 // pred_fallthru
      _
    // Predicated region
    $region14: #{sag_network_forward.1} parent=1 // pred_check
      _
    $region15: #{sag_network_forward.1} parent=1 // pred_check_branch
      %64 = sbr.rel (0) target = $region17
    $region16: #{sag_network_forward.1} parent=1 // pred_region
      %s66 = ssub.s32 16, 16
      %67 = vsyncadd [#allocation9], %s66
      %s69 = sshll.u32 [#allocation10], 4
      %s70 = int_to_ptr.vmem [resolvable:$true] %s69
      %72 = dma.hbm_to_vmem [thread:$0]  %s3, 16, %s70, [#allocation9]
    $region17: #{sag_network_forward.1} parent=1 // pred_fallthru
      _
    // Predicated region
    $region18: #{sag_network_forward.1} parent=1 // pred_check
      _
    $region19: #{sag_network_forward.1} parent=1 // pred_check_branch
      %74 = sbr.rel (0) target = $region21
    $region20: #{sag_network_forward.1} parent=1 // pred_region
      %s76 = ssub.s32 16, 16
      %77 = vsyncadd [#allocation12], %s76
      %s79 = sshll.u32 [#allocation11], 4
      %s80 = int_to_ptr.vmem [resolvable:$true] %s79
      %82 = dma.hbm_to_vmem [thread:$0]  %s4, 16, %s80, [#allocation12]
    $region21: #{sag_network_forward.1} parent=1 // pred_fallthru
      _
    // Predicated region
    $region22: #{sag_network_forward.1} parent=1 // pred_check
      _
    $region23: #{sag_network_forward.1} parent=1 // pred_check_branch
      %84 = sbr.rel (0) target = $region25
    $region24: #{sag_network_forward.1} parent=1 // pred_region
      _
    $region25: #{sag_network_forward.1} parent=1 // pred_fallthru
      _
    // Predicated region
    $region26: #{sag_network_forward.1} parent=1 // pred_check
      _
    $region27: #{sag_network_forward.1} parent=1 // pred_check_branch
      %86 = sbr.rel (0) target = $region29
    $region28: #{sag_network_forward.1} parent=1 // pred_region
      _
    $region29: #{sag_network_forward.1} parent=1 // pred_fallthru
      _
    // Predicated region
    $region30: #{sag_network_forward.1} parent=1 // pred_check
      _
    $region31: #{sag_network_forward.1} parent=1 // pred_check_branch
      %88 = sbr.rel (0) target = $region33
    $region32: #{sag_network_forward.1} parent=1 // pred_region
      %s90 = ssub.s32 16, 16
      %91 = vsyncadd [#allocation12], %s90
      %s93 = sshll.u32 [#allocation13], 4
      %s94 = int_to_ptr.vmem [resolvable:$true] %s93
      %96 = dma.hbm_to_vmem [thread:$0]  %s7, 16, %s94, [#allocation12]
    $region33: #{sag_network_forward.1} parent=1 // pred_fallthru
      _
    // Predicated region
    $region34: #{sag_network_forward.1} parent=1 // pred_check
      _
    $region35: #{sag_network_forward.1} parent=1 // pred_check_branch
      %98 = sbr.rel (0) target = $region37
    $region36: #{sag_network_forward.1} parent=1 // pred_region
      %s100 = ssub.s32 16, 16
      %101 = vsyncadd [#allocation15], %s100
      %s103 = sshll.u32 [#allocation14], 4
      %s104 = int_to_ptr.vmem [resolvable:$true] %s103
      %106 = dma.hbm_to_vmem [thread:$0]  %s8, 16, %s104, [#allocation15]
    $region37: #{sag_network_forward.1} parent=1 // pred_fallthru
      _
    // Predicated region
    $region38: #{sag_network_forward.1} parent=1 // pred_check
      _
    $region39: #{sag_network_forward.1} parent=1 // pred_check_branch
      %108 = sbr.rel (0) target = $region41
    $region40: #{sag_network_forward.1} parent=1 // pred_region
      _
    $region41: #{sag_network_forward.1} parent=1 // pred_fallthru
      _
    // Predicated region
    $region42: #{sag_network_forward.1} parent=1 // pred_check
      _
    $region43: #{sag_network_forward.1} parent=1 // pred_check_branch
      %110 = sbr.rel (0) target = $region45
    $region44: #{sag_network_forward.1} parent=1 // pred_region
      _
    $region45: #{sag_network_forward.1} parent=1 // pred_fallthru
      _
    // Predicated region
    $region46: #{sag_network_forward.1} parent=1 // pred_check
      _
    $region47: #{sag_network_forward.1} parent=1 // pred_check_branch
      %112 = sbr.rel (0) target = $region49
    $region48: #{sag_network_forward.1} parent=1 // pred_region
      %s114 = ssub.s32 16, 16
      %115 = vsyncadd [#allocation15], %s114
      %s117 = sshll.u32 [#allocation16], 4
      %s118 = int_to_ptr.vmem [resolvable:$true] %s117
      %120 = dma.hbm_to_vmem [thread:$0]  %s11, 16, %s118, [#allocation15]
    $region49: #{sag_network_forward.1} parent=1 // pred_fallthru
      _
    // Predicated region
    $region50: #{sag_network_forward.1} parent=1 // pred_check
      _
    $region51: #{sag_network_forward.1} parent=1 // pred_check_branch
      %122 = sbr.rel (0) target = $region53
    $region52: #{sag_network_forward.1} parent=1 // pred_region
      %s124 = ssub.s32 16, 16
      %125 = vsyncadd [#allocation18], %s124
      %s127 = sshll.u32 [#allocation17], 4
      %s128 = int_to_ptr.vmem [resolvable:$true] %s127
      %130 = dma.hbm_to_vmem [thread:$0]  %s12, 16, %s128, [#allocation18]
    $region53: #{sag_network_forward.1} parent=1 // pred_fallthru
      _
    // Predicated region
    $region54: #{sag_network_forward.1} parent=1 // pred_check
      _
    $region55: #{sag_network_forward.1} parent=1 // pred_check_branch
      %132 = sbr.rel (0) target = $region57
    $region56: #{sag_network_forward.1} parent=1 // pred_region
      _
    $region57: #{sag_network_forward.1} parent=1 // pred_fallthru
      _
    // Predicated region
    $region58: #{sag_network_forward.1} parent=1 // pred_check
      _
    $region59: #{sag_network_forward.1} parent=1 // pred_check_branch
      %134 = sbr.rel (0) target = $region61
    $region60: #{sag_network_forward.1} parent=1 // pred_region
      _
    $region61: #{sag_network_forward.1} parent=1 // pred_fallthru
      _
    // Predicated region
    $region62: #{sag_network_forward.1} parent=1 // pred_check
      _
    $region63: #{sag_network_forward.1} parent=1 // pred_check_branch
      %136 = sbr.rel (0) target = $region65
    $region64: #{sag_network_forward.1} parent=1 // pred_region
      %s138 = ssub.s32 512, 512
      %139 = vsyncadd [#allocation18], %s138
      %s140 = sshll.u32 [#allocation19], 4
      %s141 = int_to_ptr.vmem [resolvable:$true] %s140
      %146 = dma.hbm_to_vmem [thread:$0]  %s15, 512, %s141, [#allocation18], 128, 128, 8
    $region65: #{sag_network_forward.1} parent=1 // pred_fallthru
      _
    // Predicated region
    $region66: #{sag_network_forward.1} parent=1 // pred_check
      _
    $region67: #{sag_network_forward.1} parent=1 // pred_check_branch
      %148 = sbr.rel (0) target = $region69
    $region68: #{sag_network_forward.1} parent=1 // pred_region
      _
    $region69: #{sag_network_forward.1} parent=1 // pred_fallthru
      _
    // Predicated region
    $region70: #{sag_network_forward.1} parent=1 // pred_check
      _
    $region71: #{sag_network_forward.1} parent=1 // pred_check_branch
      %150 = sbr.rel (0) target = $region73
    $region72: #{sag_network_forward.1} parent=1 // pred_region
      _
    $region73: #{sag_network_forward.1} parent=1 // pred_fallthru
      _
    // Predicated region
    $region74: #{sag_network_forward.1} parent=1 // pred_check
      _
    $region75: #{sag_network_forward.1} parent=1 // pred_check_branch
      %152 = sbr.rel (0) target = $region77
    $region76: #{sag_network_forward.1} parent=1 // pred_region
      _
    $region77: #{sag_network_forward.1} parent=1 // pred_fallthru
      _
    // Predicated region
    $region78: #{sag_network_forward.1} parent=1 // pred_check
      _
    $region79: #{sag_network_forward.1} parent=1 // pred_check_branch
      %154 = sbr.rel (0) target = $region81
    $region80: #{sag_network_forward.1} parent=1 // pred_region
      %s156 = ssub.s32 256, 256
      %157 = vsyncadd [#allocation21], %s156
      %s158 = sshll.u32 [#allocation20], 4
      %s159 = int_to_ptr.vmem [resolvable:$true] %s158
      %164 = dma.hbm_to_vmem [thread:$0]  %s19, 256, %s159, [#allocation21], 128, 128, 8
    $region81: #{sag_network_forward.1} parent=1 // pred_fallthru
      _
    // Predicated region
    $region82: #{sag_network_forward.1} parent=1 // pred_check
      _
    $region83: #{sag_network_forward.1} parent=1 // pred_check_branch
      %166 = sbr.rel (0) target = $region85
    $region84: #{sag_network_forward.1} parent=1 // pred_region
      _
    $region85: #{sag_network_forward.1} parent=1 // pred_fallthru
      _
    // Predicated region
    $region86: #{sag_network_forward.1} parent=1 // pred_check
      _
    $region87: #{sag_network_forward.1} parent=1 // pred_check_branch
      %168 = sbr.rel (0) target = $region89
    $region88: #{sag_network_forward.1} parent=1 // pred_region
      %169 = dma.done [#allocation6], 256
    $region89: #{sag_network_forward.1} parent=1 // pred_fallthru
      _
    // Predicated region
    $region90: #{sag_network_forward.1} parent=1 // pred_check
      _
    $region91: #{sag_network_forward.1} parent=1 // pred_check_branch
      %171 = sbr.rel (0) target = $region93
    $region92: #{sag_network_forward.1} parent=1 // pred_region
      %172 = dma.done [#allocation9], 128
    $region93: #{sag_network_forward.1} parent=1 // pred_fallthru
      _
    // Predicated region
    $region94: #{sag_network_forward.1} parent=1 // pred_check
      _
    $region95: #{sag_network_forward.1} parent=1 // pred_check_branch
      %174 = sbr.rel (0) target = $region97
    $region96: #{sag_network_forward.1} parent=1 // pred_region
      %175 = dma.done [#allocation9], 16
    $region97: #{sag_network_forward.1} parent=1 // pred_fallthru
      _
    // Predicated region
    $region98: #{sag_network_forward.1} parent=1 // pred_check
      _
    $region99: #{sag_network_forward.1} parent=1 // pred_check_branch
      %177 = sbr.rel (0) target = $region101
    $region100: #{sag_network_forward.1} parent=1 // pred_region
      %178 = dma.done [#allocation12], 16
    $region101: #{sag_network_forward.1} parent=1 // pred_fallthru
      _
    // Predicated region
    $region102: #{sag_network_forward.1} parent=1 // pred_check
      _
    $region103: #{sag_network_forward.1} parent=1 // pred_check_branch
      %180 = sbr.rel (0) target = $region105
    $region104: #{sag_network_forward.1} parent=1 // pred_region
      %181 = dma.done [#allocation12], 16
    $region105: #{sag_network_forward.1} parent=1 // pred_fallthru
      _
    // Predicated region
    $region106: #{sag_network_forward.1} parent=1 // pred_check
      _
    $region107: #{sag_network_forward.1} parent=1 // pred_check_branch
      %183 = sbr.rel (0) target = $region109
    $region108: #{sag_network_forward.1} parent=1 // pred_region
      %184 = dma.done [#allocation15], 16
    $region109: #{sag_network_forward.1} parent=1 // pred_fallthru
      _
    // Predicated region
    $region110: #{sag_network_forward.1} parent=1 // pred_check
      _
    $region111: #{sag_network_forward.1} parent=1 // pred_check_branch
      %186 = sbr.rel (0) target = $region113
    $region112: #{sag_network_forward.1} parent=1 // pred_region
      %187 = dma.done [#allocation15], 16
    $region113: #{sag_network_forward.1} parent=1 // pred_fallthru
      _
    // Predicated region
    $region114: #{sag_network_forward.1} parent=1 // pred_check
      _
    $region115: #{sag_network_forward.1} parent=1 // pred_check_branch
      %189 = sbr.rel (0) target = $region117
    $region116: #{sag_network_forward.1} parent=1 // pred_region
      %190 = dma.done [#allocation18], 16
    $region117: #{sag_network_forward.1} parent=1 // pred_fallthru
      _
    // Predicated region
    $region118: #{sag_network_forward.1} parent=1 // pred_check
      _
    $region119: #{sag_network_forward.1} parent=1 // pred_check_branch
      %192 = sbr.rel (0) target = $region121
    $region120: #{sag_network_forward.1} parent=1 // pred_region
      %193 = dma.done [#allocation18], 512
    $region121: #{sag_network_forward.1} parent=1 // pred_fallthru
      _
    // Predicated region
    $region122: #{sag_network_forward.1} parent=1 // pred_check
      _
    $region123: #{sag_network_forward.1} parent=1 // pred_check_branch
      %195 = sbr.rel (0) target = $region125
    $region124: #{sag_network_forward.1} parent=1 // pred_region
      %196 = dma.done [#allocation21], 256
    $region125: #{sag_network_forward.1} parent=1 // pred_fallthru
      _
    %v198 = vld [vmem:[#allocation5] sm:$0xff]
    %v199 = vld [vmem:[#allocation5 + $0x8] sm:$0xff]
    %v200 = vpack.c.bf16 %v199, %v198
    %v201 = vld [vmem:[%s1] sm:$0xff]
    %v202 = vld [vmem:[%s1 + $0x8] sm:$0xff]
    %v203 = vlaneseq
    %v204 = vshrl.u32 %v203, 7
    %v205 = vadd.s32 %v204, 8
    %v206 = vlaneseq
    %v207 = vand.u32 %v206, 127
    %vm208 = vcmp.eq.s32.totalorder %v204, %v207
    %vm209 = vcmp.eq.s32.totalorder %v205, %v207
    %v210 = vsel %vm208, 1, 0
    %v211 = vsel %vm209, 1, 0
    %v212 = vcvt.s32.f32 %v210
    %v213 = vcvt.s32.f32 %v211
    %v214 = vld [vmem:[#allocation8] sm:$0xff]
    %v215 = vld [vmem:[#allocation10] sm:$0x1]
    %v216 = vld [vmem:[#allocation11] sm:$0x1]
    %v217 = vld [vmem:[#allocation2] sm:$0x1]
    %vm218 = vcmask 130048
    %v219 = vsel %vm218, %v198, 0.0
    %220 = vadd.xlane.f32.xlu0 %v219
    %v221 = vpop.xlane.xlu0 %220
    %v222 = vsel %vm218, %v199, 0.0
    %223 = vadd.xlane.f32.xlu0 %v222
    %v224 = vpop.xlane.xlu0 %223
    %v225 = vmax.f32 %v221, 1.0
    %v226 = vmax.f32 %v224, 1.0
    %v227 = vrsqrt.pop %v225
    %v228 = vrsqrt.pop %v226
    %v229 = vpack.c.bf16 %v202, %v201
    %v230 = vpack.c.bf16 %v214, %v214
    %vm231 = vcmask 64512
    %v233 = vsel %vm231, %v229, 0
    %vm235 = vcmask 1043456
    %v237 = vsel %vm235, %v230, 0
    %239 = vmatprep.subr.bf16.mxu0 0
    %240 = vmatpush1.bf16.msra.mxu0 0
    %241 = vmatprep.subr.bf16.mxu0 0
    %242 = vmatpush1.bf16.msra.mxu0 0
    %243 = vmatprep.subr.bf16.mxu0 0
    %244 = vmatpush1.bf16.msra.mxu0 0
    %245 = vmatprep.subr.bf16.mxu0 0
    %246 = vmatpush1.bf16.msra.mxu0 0
    %247 = vmatprep.subr.bf16.mxu0 0
    %248 = vmatpush1.bf16.msra.mxu0 0
    %249 = vmatprep.subr.bf16.mxu0 0
    %250 = vmatpush1.bf16.msra.mxu0 0
    %251 = vmatprep.subr.bf16.mxu0 0
    %252 = vmatpush1.bf16.msra.mxu0 0
    %253 = vmatprep.subr.bf16.mxu0 0
    %254 = vmatpush1.bf16.msra.mxu0 %v237
    %255 = vmatprep.subr.bf16.mxu0 0
    %256 = vmatpush2.bf16.msra.mxu0 0
    %257 = vmatprep.subr.bf16.mxu0 0
    %258 = vmatpush2.bf16.msra.mxu0 0
    %259 = vmatprep.subr.bf16.mxu0 0
    %260 = vmatpush2.bf16.msra.mxu0 0
    %261 = vmatprep.subr.bf16.mxu0 0
    %262 = vmatpush2.bf16.msra.mxu0 0
    %263 = vmatprep.subr.bf16.mxu0 0
    %264 = vmatpush2.bf16.msra.mxu0 0
    %265 = vmatprep.subr.bf16.mxu0 0
    %266 = vmatpush2.bf16.msra.mxu0 0
    %267 = vmatprep.subr.bf16.mxu0 0
    %268 = vmatpush2.bf16.msra.mxu0 0
    %269 = vmatprep.subr.bf16.mxu0 0
    %270 = vmatpush2.bf16.msra.mxu0 0
    %271 = vmatprep.mubr.bf16.mxu0 0
    %272 = vmatmul.mubr.bf16.gmra.mxu0 %v233
    %v273 = vpop.f32.mrf.mxu0
    %v274 = vadd.f32 0.0, %v273
    %v275 = vpop.f32.mrf.mxu0
    %v276 = vpop.f32.mrf.mxu0
    %v277 = vadd.f32 0.0, %v276
    %v278 = vpop.f32.mrf.mxu0
    %279 = vdwg.mxu0
    %v280 = vmul.f32 %v227, %v274
    %v281 = vmul.f32 %v228, %v277
    %v282 = vpack.c.bf16 %v281, %v280
    %v284 = vsel %vm218, %v200, 0
    %286 = vmatprep.subr.bf16.mxu0 0
    %287 = vmatpush1.bf16.msra.mxu0 0
    %288 = vmatprep.subr.bf16.mxu0 0
    %289 = vmatpush1.bf16.msra.mxu0 0
    %290 = vmatprep.subr.bf16.mxu0 0
    %291 = vmatpush1.bf16.msra.mxu0 0
    %292 = vmatprep.subr.bf16.mxu0 0
    %293 = vmatpush1.bf16.msra.mxu0 0
    %294 = vmatprep.subr.bf16.mxu0 0
    %295 = vmatpush1.bf16.msra.mxu0 0
    %296 = vmatprep.subr.bf16.mxu0 0
    %297 = vmatpush1.bf16.msra.mxu0 0
    %298 = vmatprep.subr.bf16.mxu0 0
    %299 = vmatpush1.bf16.msra.mxu0 0
    %300 = vmatprep.subr.bf16.mxu0 0
    %301 = vmatpush1.bf16.msra.mxu0 %v282
    %302 = vmatprep.subr.bf16.mxu0 0
    %303 = vmatpush2.bf16.msra.mxu0 0
    %304 = vmatprep.subr.bf16.mxu0 0
    %305 = vmatpush2.bf16.msra.mxu0 0
    %306 = vmatprep.subr.bf16.mxu0 0
    %307 = vmatpush2.bf16.msra.mxu0 0
    %308 = vmatprep.subr.bf16.mxu0 0
    %309 = vmatpush2.bf16.msra.mxu0 0
    %310 = vmatprep.subr.bf16.mxu0 0
    %311 = vmatpush2.bf16.msra.mxu0 0
    %312 = vmatprep.subr.bf16.mxu0 0
    %313 = vmatpush2.bf16.msra.mxu0 0
    %314 = vmatprep.subr.bf16.mxu0 0
    %315 = vmatpush2.bf16.msra.mxu0 0
    %316 = vmatprep.subr.bf16.mxu0 0
    %317 = vmatpush2.bf16.msra.mxu0 0
    %318 = vmatprep.mubr.bf16.mxu0 0
    %319 = vmatmul.mubr.bf16.gmra.mxu0 %v284
    %v320 = vpop.f32.mrf.mxu0
    %v321 = vadd.f32 0.0, %v320
    %v322 = vpop.f32.mrf.mxu0
    %v323 = vpop.f32.mrf.mxu0
    %v324 = vadd.f32 0.0, %v323
    %v325 = vpop.f32.mrf.mxu0
    %326 = vdwg.mxu0
    %v327 = vmul.f32 %v227, %v321
    %v328 = vmul.f32 %v228, %v324
    %v330 = vlaneseq
    %v331 = vshrl.u32 %v330, 7
    %v332 = vsub.s32 0, %v331
    %v333 = vrot.slane %v215, %v332
    %v335 = vadd.f32 %v327, %v333
    %v336 = vadd.f32 %v328, %v333
    %v337 = vmax.f32 %v335, 0.0
    %v338 = vmax.f32 %v336, 0.0
    %v339 = vmul.f32 %v227, %v337
    %v340 = vmul.f32 %v228, %v338
    %v341 = vpack.c.bf16 %v340, %v339
    %342 = vmatprep.subr.bf16.mxu0 0
    %343 = vmatpush1.bf16.msra.mxu0 0
    %344 = vmatprep.subr.bf16.mxu0 0
    %345 = vmatpush1.bf16.msra.mxu0 0
    %346 = vmatprep.subr.bf16.mxu0 0
    %347 = vmatpush1.bf16.msra.mxu0 0
    %348 = vmatprep.subr.bf16.mxu0 0
    %349 = vmatpush1.bf16.msra.mxu0 0
    %350 = vmatprep.subr.bf16.mxu0 0
    %351 = vmatpush1.bf16.msra.mxu0 0
    %352 = vmatprep.subr.bf16.mxu0 0
    %353 = vmatpush1.bf16.msra.mxu0 0
    %354 = vmatprep.subr.bf16.mxu0 0
    %355 = vmatpush1.bf16.msra.mxu0 0
    %356 = vmatprep.subr.bf16.mxu0 0
    %357 = vmatpush1.bf16.msra.mxu0 %v341
    %358 = vmatprep.subr.bf16.mxu0 0
    %359 = vmatpush2.bf16.msra.mxu0 0
    %360 = vmatprep.subr.bf16.mxu0 0
    %361 = vmatpush2.bf16.msra.mxu0 0
    %362 = vmatprep.subr.bf16.mxu0 0
    %363 = vmatpush2.bf16.msra.mxu0 0
    %364 = vmatprep.subr.bf16.mxu0 0
    %365 = vmatpush2.bf16.msra.mxu0 0
    %366 = vmatprep.subr.bf16.mxu0 0
    %367 = vmatpush2.bf16.msra.mxu0 0
    %368 = vmatprep.subr.bf16.mxu0 0
    %369 = vmatpush2.bf16.msra.mxu0 0
    %370 = vmatprep.subr.bf16.mxu0 0
    %371 = vmatpush2.bf16.msra.mxu0 0
    %372 = vmatprep.subr.bf16.mxu0 0
    %373 = vmatpush2.bf16.msra.mxu0 0
    %374 = vmatprep.mubr.bf16.mxu0 0
    %375 = vmatmul.mubr.bf16.gmra.mxu0 %v284
    %v376 = vpop.f32.mrf.mxu0
    %v377 = vadd.f32 0.0, %v376
    %v378 = vpop.f32.mrf.mxu0
    %v379 = vpop.f32.mrf.mxu0
    %v380 = vadd.f32 0.0, %v379
    %v381 = vpop.f32.mrf.mxu0
    %382 = vdwg.mxu0
    %v384 = vlaneseq
    %v385 = vshrl.u32 %v384, 7
    %v386 = vsub.s32 0, %v385
    %v387 = vrot.slane %v216, %v386
    %v389 = vmul.f32 %v377, %v387
    %v390 = vmul.f32 %v380, %v387
    %vm391 = vcmask 261120
    %v392 = vsel %vm391, %v389, 0.0
    %393 = vadd.xlane.f32.xlu0 %v392
    %v394 = vpop.xlane.xlu0 %393
    %v395 = vsel %vm391, %v390, 0.0
    %396 = vadd.xlane.f32.xlu0 %v395
    %v397 = vpop.xlane.xlu0 %396
    %v398 = vmul.f32 %v227, %v394
    %v399 = vmul.f32 %v228, %v397
    %v401 = vlaneseq
    %v402 = vshrl.u32 %v401, 7
    %v403 = vsub.s32 0, %v402
    %v404 = vrot.slane %v217, %v403
    %v406 = vadd.f32 %v398, %v404
    %v407 = vadd.f32 %v399, %v404
    %409 = vset.pattern.permute.xlu0 0
    %410 = vperm.xlu0 %409, %v406
    %v411 = vpop.permute.xlu0 %410
    %414 = vset.pattern.permute.xlu0 0
    %415 = vperm.xlu0 %414, %v407
    %v416 = vpop.permute.xlu0 %415
    %v418 = vmul.f32 %v411, %v212
    %v419 = vmul.f32 %v416, %v213
    %v420 = vsel %vm218, %v418, 0.0
    %v421 = vsel %vm218, %v419, 0.0
    %v422 = vadd.f32 %v420, %v421
    %v423 = vrot.slane %v422, 4
    %v424 = vadd.f32 %v422, %v423
    %v425 = vrot.slane %v424, 2
    %v426 = vadd.f32 %v424, %v425
    %v427 = vrot.slane %v426, 1
    %v428 = vadd.f32 %v426, %v427
    %vm429 = vcmp.gt.f32.partialorder 1.0, 0.0
    %vm430 = vcmp.gt.f32.partialorder %v428, %v411
    %vm431 = vcmp.gt.f32.partialorder %v428, %v416
    %vm432 = vcmp.eq.f32.partialorder %v428, %v411
    %vm433 = vcmp.eq.f32.partialorder %v428, %v416
    %vm434 = vcmp.lt.s32.totalorder %v207, %v204
    %vm435 = vcmp.lt.s32.totalorder %v207, %v205
    %vm436 = vmand %vm432, %vm434
    %vm437 = vmand %vm433, %vm435
    %vm438 = vmor %vm430, %vm436
    %vm439 = vmor %vm431, %vm437
    %v440 = vsel %vm429, 1, 0
    %vm441 = vcmp.eq.s32.totalorder %v440, 1
    %vm442 = vmand %vm441, %vm438
    %vm443 = vmand %vm441, %vm439
    %v444 = vsel %vm442, 1.0, 0.0
    %v445 = vsel %vm443, 1.0, 0.0
    %v446 = vsel %vm218, %v444, 0.0
    %447 = vadd.xlane.f32.xlu0 %v446
    %v448 = vpop.xlane.xlu0 %447
    %v449 = vsel %vm218, %v445, 0.0
    %450 = vadd.xlane.f32.xlu0 %v449
    %v451 = vpop.xlane.xlu0 %450
    %vm452 = vcmp.lt.f32.partialorder %v448, 8.0
    %vm453 = vcmp.lt.f32.partialorder %v451, 8.0
    %vm454 = vmand %vm452, %vm429
    %vm455 = vmand %vm453, %vm429
    %v456 = vsel %vm454, 1.0, 0.0
    %v457 = vsel %vm455, 1.0, 0.0
    %v458 = vmul.f32 %v456, %v212
    %v459 = vmul.f32 %v457, %v213
    %v460 = vsel %vm218, %v458, 0.0
    %v461 = vsel %vm218, %v459, 0.0
    %v462 = vadd.f32 %v460, %v461
    %v463 = vrot.slane %v462, 4
    %v464 = vadd.f32 %v462, %v463
    %v465 = vrot.slane %v464, 2
    %v466 = vadd.f32 %v464, %v465
    %v467 = vrot.slane %v466, 1
    %v468 = vadd.f32 %v466, %v467
    %v469 = vtanh.pop %v406
    %v470 = vtanh.pop %v407
    %472 = vset.pattern.permute.xlu0 0
    %473 = vperm.xlu0 %472, %v469
    %v474 = vpop.permute.xlu0 %473
    %477 = vset.pattern.permute.xlu0 0
    %478 = vperm.xlu0 %477, %v470
    %v479 = vpop.permute.xlu0 %478
    %v481 = vmul.f32 %v337, %v474
    %v482 = vmul.f32 %v338, %v479
    %v483 = vmul.f32 %v481, %v456
    %v484 = vmul.f32 %v482, %v457
    %v485 = vsel %vm391, %v483, 0.0
    %v486 = vsel %vm391, %v484, 0.0
    %v487 = vadd.f32 %v485, %v486
    %v488 = vrot.slane %v487, 4
    %v489 = vadd.f32 %v487, %v488
    %v490 = vrot.slane %v489, 2
    %v491 = vadd.f32 %v489, %v490
    %v492 = vrot.slane %v491, 1
    %v493 = vadd.f32 %v491, %v492
    %v494 = vmul.f32 %v493, 0.125
    %v495 = vadd.f32 %v494, 0.0
    %vm496 = vcmp.gt.f32.partialorder %v456, 0.0
    %vm497 = vcmp.gt.f32.partialorder %v457, 0.0
    %v498 = vsel %vm496, 1, 0
    %v499 = vsel %vm497, 1, 0
    %vm500 = vcmp.eq.s32.totalorder %v498, 1
    %vm501 = vcmp.eq.s32.totalorder %v499, 1
    %v502 = vsel %vm500, %v483, -inf
    %v503 = vsel %vm501, %v484, -inf
    %v504 = vsel %vm391, %v502, -inf
    %v505 = vsel %vm391, %v503, -inf
    %v506 = vmax.f32 %v504, %v505
    %v507 = vrot.slane %v506, 4
    %v508 = vmax.f32 %v506, %v507
    %v509 = vrot.slane %v508, 2
    %v510 = vmax.f32 %v508, %v509
    %v511 = vrot.slane %v510, 1
    %v512 = vmax.f32 %v510, %v511
    %v513 = vadd.f32 %v512, 0.0
    %v514 = vld [vmem:[%s6] sm:$0xff]
    %v515 = vld [vmem:[%s6 + $0x8] sm:$0xff]
    %v516 = vld [vmem:[%s6 + $0x10] sm:$0xff]
    %v517 = vld [vmem:[%s6 + $0x18] sm:$0xff]
    %v518 = vld [vmem:[#allocation13] sm:$0x1]
    %v519 = vld [vmem:[#allocation14] sm:$0x1]
    %v520 = vld [vmem:[#allocation3] sm:$0x1]
    %v521 = vmul.f32 %v198, %v468
    %v522 = vmul.f32 %v199, %v468
    %v523 = vsel %vm218, %v521, 0.0
    %524 = vadd.xlane.f32.xlu0 %v523
    %v525 = vpop.xlane.xlu0 %524
    %v526 = vsel %vm218, %v522, 0.0
    %527 = vadd.xlane.f32.xlu0 %v526
    %v528 = vpop.xlane.xlu0 %527
    %v529 = vmax.f32 %v525, 1.0
    %v530 = vmax.f32 %v528, 1.0
    %v531 = vrsqrt.pop %v529
    %v532 = vrsqrt.pop %v530
    %v533 = vmul.f32 %v483, %v456
    %v534 = vmul.f32 %v484, %v457
    %v535 = vpack.c.bf16 %v534, %v533
    %v536 = vpack.c.bf16 %v515, %v514
    %v537 = vpack.c.bf16 %v517, %v516
    %v539 = vsel %vm391, %v535, 0
    %541 = vmatprep.subr.bf16.mxu0 0
    %542 = vmatpush1.bf16.msra.mxu0 0
    %543 = vmatprep.subr.bf16.mxu0 0
    %544 = vmatpush1.bf16.msra.mxu0 0
    %545 = vmatprep.subr.bf16.mxu0 0
    %546 = vmatpush1.bf16.msra.mxu0 0
    %547 = vmatprep.subr.bf16.mxu0 0
    %548 = vmatpush1.bf16.msra.mxu0 0
    %549 = vmatprep.subr.bf16.mxu0 0
    %550 = vmatpush1.bf16.msra.mxu0 0
    %551 = vmatprep.subr.bf16.mxu0 0
    %552 = vmatpush1.bf16.msra.mxu0 0
    %553 = vmatprep.subr.bf16.mxu0 0
    %554 = vmatpush1.bf16.msra.mxu0 %v537
    %555 = vmatprep.subr.bf16.mxu0 0
    %556 = vmatpush1.bf16.msra.mxu0 %v536
    %557 = vmatprep.subr.bf16.mxu0 0
    %558 = vmatpush2.bf16.msra.mxu0 0
    %559 = vmatprep.subr.bf16.mxu0 0
    %560 = vmatpush2.bf16.msra.mxu0 0
    %561 = vmatprep.subr.bf16.mxu0 0
    %562 = vmatpush2.bf16.msra.mxu0 0
    %563 = vmatprep.subr.bf16.mxu0 0
    %564 = vmatpush2.bf16.msra.mxu0 0
    %565 = vmatprep.subr.bf16.mxu0 0
    %566 = vmatpush2.bf16.msra.mxu0 0
    %567 = vmatprep.subr.bf16.mxu0 0
    %568 = vmatpush2.bf16.msra.mxu0 0
    %569 = vmatprep.subr.bf16.mxu0 0
    %570 = vmatpush2.bf16.msra.mxu0 0
    %571 = vmatprep.subr.bf16.mxu0 0
    %572 = vmatpush2.bf16.msra.mxu0 0
    %573 = vmatprep.mubr.bf16.mxu0 0
    %574 = vmatmul.mubr.bf16.gmra.mxu0 %v539
    %v575 = vpop.f32.mrf.mxu0
    %v576 = vadd.f32 0.0, %v575
    %v577 = vpop.f32.mrf.mxu0
    %v578 = vpop.f32.mrf.mxu0
    %v579 = vadd.f32 0.0, %v578
    %v580 = vpop.f32.mrf.mxu0
    %581 = vdwg.mxu0
    %v582 = vmul.f32 %v531, %v576
    %v583 = vmul.f32 %v532, %v579
    %v584 = vpack.c.bf16 %v583, %v582
    %585 = vmatprep.subr.bf16.mxu0 0
    %586 = vmatpush1.bf16.msra.mxu0 0
    %587 = vmatprep.subr.bf16.mxu0 0
    %588 = vmatpush1.bf16.msra.mxu0 0
    %589 = vmatprep.subr.bf16.mxu0 0
    %590 = vmatpush1.bf16.msra.mxu0 0
    %591 = vmatprep.subr.bf16.mxu0 0
    %592 = vmatpush1.bf16.msra.mxu0 0
    %593 = vmatprep.subr.bf16.mxu0 0
    %594 = vmatpush1.bf16.msra.mxu0 0
    %595 = vmatprep.subr.bf16.mxu0 0
    %596 = vmatpush1.bf16.msra.mxu0 0
    %597 = vmatprep.subr.bf16.mxu0 0
    %598 = vmatpush1.bf16.msra.mxu0 0
    %599 = vmatprep.subr.bf16.mxu0 0
    %600 = vmatpush1.bf16.msra.mxu0 %v584
    %601 = vmatprep.subr.bf16.mxu0 0
    %602 = vmatpush2.bf16.msra.mxu0 0
    %603 = vmatprep.subr.bf16.mxu0 0
    %604 = vmatpush2.bf16.msra.mxu0 0
    %605 = vmatprep.subr.bf16.mxu0 0
    %606 = vmatpush2.bf16.msra.mxu0 0
    %607 = vmatprep.subr.bf16.mxu0 0
    %608 = vmatpush2.bf16.msra.mxu0 0
    %609 = vmatprep.subr.bf16.mxu0 0
    %610 = vmatpush2.bf16.msra.mxu0 0
    %611 = vmatprep.subr.bf16.mxu0 0
    %612 = vmatpush2.bf16.msra.mxu0 0
    %613 = vmatprep.subr.bf16.mxu0 0
    %614 = vmatpush2.bf16.msra.mxu0 0
    %615 = vmatprep.subr.bf16.mxu0 0
    %616 = vmatpush2.bf16.msra.mxu0 0
    %617 = vmatprep.mubr.bf16.mxu0 0
    %618 = vmatmul.mubr.bf16.gmra.mxu0 %v284
    %v619 = vpop.f32.mrf.mxu0
    %v620 = vadd.f32 0.0, %v619
    %v621 = vpop.f32.mrf.mxu0
    %v622 = vpop.f32.mrf.mxu0
    %v623 = vadd.f32 0.0, %v622
    %v624 = vpop.f32.mrf.mxu0
    %625 = vdwg.mxu0
    %v626 = vmul.f32 %v531, %v620
    %v627 = vmul.f32 %v532, %v623
    %v629 = vlaneseq
    %v630 = vshrl.u32 %v629, 7
    %v631 = vsub.s32 0, %v630
    %v632 = vrot.slane %v518, %v631
    %v634 = vadd.f32 %v626, %v632
    %v635 = vadd.f32 %v627, %v632
    %v636 = vmax.f32 %v634, 0.0
    %v637 = vmax.f32 %v635, 0.0
    %v638 = vmul.f32 %v636, %v456
    %v639 = vmul.f32 %v637, %v457
    %v640 = vmul.f32 %v531, %v638
    %v641 = vmul.f32 %v532, %v639
    %v642 = vpack.c.bf16 %v641, %v640
    %643 = vmatprep.subr.bf16.mxu0 0
    %644 = vmatpush1.bf16.msra.mxu0 0
    %645 = vmatprep.subr.bf16.mxu0 0
    %646 = vmatpush1.bf16.msra.mxu0 0
    %647 = vmatprep.subr.bf16.mxu0 0
    %648 = vmatpush1.bf16.msra.mxu0 0
    %649 = vmatprep.subr.bf16.mxu0 0
    %650 = vmatpush1.bf16.msra.mxu0 0
    %651 = vmatprep.subr.bf16.mxu0 0
    %652 = vmatpush1.bf16.msra.mxu0 0
    %653 = vmatprep.subr.bf16.mxu0 0
    %654 = vmatpush1.bf16.msra.mxu0 0
    %655 = vmatprep.subr.bf16.mxu0 0
    %656 = vmatpush1.bf16.msra.mxu0 0
    %657 = vmatprep.subr.bf16.mxu0 0
    %658 = vmatpush1.bf16.msra.mxu0 %v642
    %659 = vmatprep.subr.bf16.mxu0 0
    %660 = vmatpush2.bf16.msra.mxu0 0
    %661 = vmatprep.subr.bf16.mxu0 0
    %662 = vmatpush2.bf16.msra.mxu0 0
    %663 = vmatprep.subr.bf16.mxu0 0
    %664 = vmatpush2.bf16.msra.mxu0 0
    %665 = vmatprep.subr.bf16.mxu0 0
    %666 = vmatpush2.bf16.msra.mxu0 0
    %667 = vmatprep.subr.bf16.mxu0 0
    %668 = vmatpush2.bf16.msra.mxu0 0
    %669 = vmatprep.subr.bf16.mxu0 0
    %670 = vmatpush2.bf16.msra.mxu0 0
    %671 = vmatprep.subr.bf16.mxu0 0
    %672 = vmatpush2.bf16.msra.mxu0 0
    %673 = vmatprep.subr.bf16.mxu0 0
    %674 = vmatpush2.bf16.msra.mxu0 0
    %675 = vmatprep.mubr.bf16.mxu0 0
    %676 = vmatmul.mubr.bf16.gmra.mxu0 %v284
    %v677 = vpop.f32.mrf.mxu0
    %v678 = vadd.f32 0.0, %v677
    %v679 = vpop.f32.mrf.mxu0
    %v680 = vpop.f32.mrf.mxu0
    %v681 = vadd.f32 0.0, %v680
    %v682 = vpop.f32.mrf.mxu0
    %683 = vdwg.mxu0
    %v685 = vlaneseq
    %v686 = vshrl.u32 %v685, 7
    %v687 = vsub.s32 0, %v686
    %v688 = vrot.slane %v519, %v687
    %v690 = vmul.f32 %v678, %v688
    %v691 = vmul.f32 %v681, %v688
    %v692 = vsel %vm391, %v690, 0.0
    %693 = vadd.xlane.f32.xlu0 %v692
    %v694 = vpop.xlane.xlu0 %693
    %v695 = vsel %vm391, %v691, 0.0
    %696 = vadd.xlane.f32.xlu0 %v695
    %v697 = vpop.xlane.xlu0 %696
    %v698 = vmul.f32 %v531, %v694
    %v699 = vmul.f32 %v532, %v697
    %v701 = vlaneseq
    %v702 = vshrl.u32 %v701, 7
    %v703 = vsub.s32 0, %v702
    %v704 = vrot.slane %v520, %v703
    %v706 = vadd.f32 %v698, %v704
    %v707 = vadd.f32 %v699, %v704
    %709 = vset.pattern.permute.xlu0 0
    %710 = vperm.xlu0 %709, %v706
    %v711 = vpop.permute.xlu0 %710
    %714 = vset.pattern.permute.xlu0 0
    %715 = vperm.xlu0 %714, %v707
    %v716 = vpop.permute.xlu0 %715
    %v718 = vmul.f32 %v711, %v212
    %v719 = vmul.f32 %v716, %v213
    %v720 = vsel %vm218, %v718, 0.0
    %v721 = vsel %vm218, %v719, 0.0
    %v722 = vadd.f32 %v720, %v721
    %v723 = vrot.slane %v722, 4
    %v724 = vadd.f32 %v722, %v723
    %v725 = vrot.slane %v724, 2
    %v726 = vadd.f32 %v724, %v725
    %v727 = vrot.slane %v726, 1
    %v728 = vadd.f32 %v726, %v727
    %vm729 = vcmp.gt.f32.partialorder %v468, 0.0
    %vm730 = vcmp.gt.f32.partialorder %v728, %v711
    %vm731 = vcmp.gt.f32.partialorder %v728, %v716
    %vm732 = vcmp.eq.f32.partialorder %v728, %v711
    %vm733 = vcmp.eq.f32.partialorder %v728, %v716
    %vm734 = vmand %vm732, %vm434
    %vm735 = vmand %vm733, %vm435
    %vm736 = vmor %vm730, %vm734
    %vm737 = vmor %vm731, %vm735
    %v738 = vsel %vm729, 1, 0
    %vm739 = vcmp.eq.s32.totalorder %v738, 1
    %vm740 = vmand %vm739, %vm736
    %vm741 = vmand %vm739, %vm737
    %v742 = vsel %vm740, 1.0, 0.0
    %v743 = vsel %vm741, 1.0, 0.0
    %v744 = vsel %vm218, %v742, 0.0
    %745 = vadd.xlane.f32.xlu0 %v744
    %v746 = vpop.xlane.xlu0 %745
    %v747 = vsel %vm218, %v743, 0.0
    %748 = vadd.xlane.f32.xlu0 %v747
    %v749 = vpop.xlane.xlu0 %748
    %vm750 = vcmp.lt.f32.partialorder %v746, 4.0
    %vm751 = vcmp.lt.f32.partialorder %v749, 4.0
    %vm752 = vmand %vm750, %vm496
    %vm753 = vmand %vm751, %vm497
    %v754 = vsel %vm752, 1.0, 0.0
    %v755 = vsel %vm753, 1.0, 0.0
    %v756 = vmul.f32 %v754, %v212
    %v757 = vmul.f32 %v755, %v213
    %v758 = vsel %vm218, %v756, 0.0
    %v759 = vsel %vm218, %v757, 0.0
    %v760 = vadd.f32 %v758, %v759
    %v761 = vrot.slane %v760, 4
    %v762 = vadd.f32 %v760, %v761
    %v763 = vrot.slane %v762, 2
    %v764 = vadd.f32 %v762, %v763
    %v765 = vrot.slane %v764, 1
    %v766 = vadd.f32 %v764, %v765
    %v767 = vtanh.pop %v706
    %v768 = vtanh.pop %v707
    %770 = vset.pattern.permute.xlu0 0
    %771 = vperm.xlu0 %770, %v767
    %v772 = vpop.permute.xlu0 %771
    %775 = vset.pattern.permute.xlu0 0
    %776 = vperm.xlu0 %775, %v768
    %v777 = vpop.permute.xlu0 %776
    %v779 = vmul.f32 %v638, %v772
    %v780 = vmul.f32 %v639, %v777
    %v781 = vmul.f32 %v779, %v754
    %v782 = vmul.f32 %v780, %v755
    %v783 = vsel %vm391, %v781, 0.0
    %v784 = vsel %vm391, %v782, 0.0
    %v785 = vadd.f32 %v783, %v784
    %v786 = vrot.slane %v785, 4
    %v787 = vadd.f32 %v785, %v786
    %v788 = vrot.slane %v787, 2
    %v789 = vadd.f32 %v787, %v788
    %v790 = vrot.slane %v789, 1
    %v791 = vadd.f32 %v789, %v790
    %v792 = vmul.f32 %v791, 0.25
    %v793 = vadd.f32 %v495, %v792
    %vm794 = vcmp.gt.f32.partialorder %v754, 0.0
    %vm795 = vcmp.gt.f32.partialorder %v755, 0.0
    %v796 = vsel %vm794, 1, 0
    %v797 = vsel %vm795, 1, 0
    %vm798 = vcmp.eq.s32.totalorder %v796, 1
    %vm799 = vcmp.eq.s32.totalorder %v797, 1
    %v800 = vsel %vm798, %v781, -inf
    %v801 = vsel %vm799, %v782, -inf
    %v802 = vsel %vm391, %v800, -inf
    %v803 = vsel %vm391, %v801, -inf
    %v804 = vmax.f32 %v802, %v803
    %v805 = vrot.slane %v804, 4
    %v806 = vmax.f32 %v804, %v805
    %v807 = vrot.slane %v806, 2
    %v808 = vmax.f32 %v806, %v807
    %v809 = vrot.slane %v808, 1
    %v810 = vmax.f32 %v808, %v809
    %v811 = vadd.f32 %v513, %v810
    %v812 = vld [vmem:[%s10] sm:$0xff]
    %v813 = vld [vmem:[%s10 + $0x8] sm:$0xff]
    %v814 = vld [vmem:[%s10 + $0x10] sm:$0xff]
    %v815 = vld [vmem:[%s10 + $0x18] sm:$0xff]
    %v816 = vld [vmem:[#allocation16] sm:$0x1]
    %v817 = vld [vmem:[#allocation17] sm:$0x1]
    %v818 = vld [vmem:[#allocation4] sm:$0x1]
    %v819 = vmul.f32 %v198, %v766
    %v820 = vmul.f32 %v199, %v766
    %v821 = vsel %vm218, %v819, 0.0
    %822 = vadd.xlane.f32.xlu0 %v821
    %v823 = vpop.xlane.xlu0 %822
    %v824 = vsel %vm218, %v820, 0.0
    %825 = vadd.xlane.f32.xlu0 %v824
    %v826 = vpop.xlane.xlu0 %825
    %v827 = vmax.f32 %v823, 1.0
    %v828 = vmax.f32 %v826, 1.0
    %v829 = vrsqrt.pop %v827
    %v830 = vrsqrt.pop %v828
    %v831 = vmul.f32 %v781, %v754
    %v832 = vmul.f32 %v782, %v755
    %v833 = vpack.c.bf16 %v832, %v831
    %v834 = vpack.c.bf16 %v813, %v812
    %v835 = vpack.c.bf16 %v815, %v814
    %v837 = vsel %vm391, %v833, 0
    %839 = vmatprep.subr.bf16.mxu0 0
    %840 = vmatpush1.bf16.msra.mxu0 0
    %841 = vmatprep.subr.bf16.mxu0 0
    %842 = vmatpush1.bf16.msra.mxu0 0
    %843 = vmatprep.subr.bf16.mxu0 0
    %844 = vmatpush1.bf16.msra.mxu0 0
    %845 = vmatprep.subr.bf16.mxu0 0
    %846 = vmatpush1.bf16.msra.mxu0 0
    %847 = vmatprep.subr.bf16.mxu0 0
    %848 = vmatpush1.bf16.msra.mxu0 0
    %849 = vmatprep.subr.bf16.mxu0 0
    %850 = vmatpush1.bf16.msra.mxu0 0
    %851 = vmatprep.subr.bf16.mxu0 0
    %852 = vmatpush1.bf16.msra.mxu0 %v835
    %853 = vmatprep.subr.bf16.mxu0 0
    %854 = vmatpush1.bf16.msra.mxu0 %v834
    %855 = vmatprep.subr.bf16.mxu0 0
    %856 = vmatpush2.bf16.msra.mxu0 0
    %857 = vmatprep.subr.bf16.mxu0 0
    %858 = vmatpush2.bf16.msra.mxu0 0
    %859 = vmatprep.subr.bf16.mxu0 0
    %860 = vmatpush2.bf16.msra.mxu0 0
    %861 = vmatprep.subr.bf16.mxu0 0
    %862 = vmatpush2.bf16.msra.mxu0 0
    %863 = vmatprep.subr.bf16.mxu0 0
    %864 = vmatpush2.bf16.msra.mxu0 0
    %865 = vmatprep.subr.bf16.mxu0 0
    %866 = vmatpush2.bf16.msra.mxu0 0
    %867 = vmatprep.subr.bf16.mxu0 0
    %868 = vmatpush2.bf16.msra.mxu0 0
    %869 = vmatprep.subr.bf16.mxu0 0
    %870 = vmatpush2.bf16.msra.mxu0 0
    %871 = vmatprep.mubr.bf16.mxu0 0
    %872 = vmatmul.mubr.bf16.gmra.mxu0 %v837
    %v873 = vpop.f32.mrf.mxu0
    %v874 = vadd.f32 0.0, %v873
    %v875 = vpop.f32.mrf.mxu0
    %v876 = vpop.f32.mrf.mxu0
    %v877 = vadd.f32 0.0, %v876
    %v878 = vpop.f32.mrf.mxu0
    %879 = vdwg.mxu0
    %v880 = vmul.f32 %v829, %v874
    %v881 = vmul.f32 %v830, %v877
    %v882 = vpack.c.bf16 %v881, %v880
    %883 = vmatprep.subr.bf16.mxu0 0
    %884 = vmatpush1.bf16.msra.mxu0 0
    %885 = vmatprep.subr.bf16.mxu0 0
    %886 = vmatpush1.bf16.msra.mxu0 0
    %887 = vmatprep.subr.bf16.mxu0 0
    %888 = vmatpush1.bf16.msra.mxu0 0
    %889 = vmatprep.subr.bf16.mxu0 0
    %890 = vmatpush1.bf16.msra.mxu0 0
    %891 = vmatprep.subr.bf16.mxu0 0
    %892 = vmatpush1.bf16.msra.mxu0 0
    %893 = vmatprep.subr.bf16.mxu0 0
    %894 = vmatpush1.bf16.msra.mxu0 0
    %895 = vmatprep.subr.bf16.mxu0 0
    %896 = vmatpush1.bf16.msra.mxu0 0
    %897 = vmatprep.subr.bf16.mxu0 0
    %898 = vmatpush1.bf16.msra.mxu0 %v882
    %899 = vmatprep.subr.bf16.mxu0 0
    %900 = vmatpush2.bf16.msra.mxu0 0
    %901 = vmatprep.subr.bf16.mxu0 0
    %902 = vmatpush2.bf16.msra.mxu0 0
    %903 = vmatprep.subr.bf16.mxu0 0
    %904 = vmatpush2.bf16.msra.mxu0 0
    %905 = vmatprep.subr.bf16.mxu0 0
    %906 = vmatpush2.bf16.msra.mxu0 0
    %907 = vmatprep.subr.bf16.mxu0 0
    %908 = vmatpush2.bf16.msra.mxu0 0
    %909 = vmatprep.subr.bf16.mxu0 0
    %910 = vmatpush2.bf16.msra.mxu0 0
    %911 = vmatprep.subr.bf16.mxu0 0
    %912 = vmatpush2.bf16.msra.mxu0 0
    %913 = vmatprep.subr.bf16.mxu0 0
    %914 = vmatpush2.bf16.msra.mxu0 0
    %915 = vmatprep.mubr.bf16.mxu0 0
    %916 = vmatmul.mubr.bf16.gmra.mxu0 %v284
    %v917 = vpop.f32.mrf.mxu0
    %v918 = vadd.f32 0.0, %v917
    %v919 = vpop.f32.mrf.mxu0
    %v920 = vpop.f32.mrf.mxu0
    %v921 = vadd.f32 0.0, %v920
    %v922 = vpop.f32.mrf.mxu0
    %923 = vdwg.mxu0
    %v924 = vmul.f32 %v829, %v918
    %v925 = vmul.f32 %v830, %v921
    %v927 = vlaneseq
    %v928 = vshrl.u32 %v927, 7
    %v929 = vsub.s32 0, %v928
    %v930 = vrot.slane %v816, %v929
    %v932 = vadd.f32 %v924, %v930
    %v933 = vadd.f32 %v925, %v930
    %v934 = vmax.f32 %v932, 0.0
    %v935 = vmax.f32 %v933, 0.0
    %v936 = vmul.f32 %v934, %v754
    %v937 = vmul.f32 %v935, %v755
    %v938 = vmul.f32 %v829, %v936
    %v939 = vmul.f32 %v830, %v937
    %v940 = vpack.c.bf16 %v939, %v938
    %941 = vmatprep.subr.bf16.mxu0 0
    %942 = vmatpush1.bf16.msra.mxu0 0
    %943 = vmatprep.subr.bf16.mxu0 0
    %944 = vmatpush1.bf16.msra.mxu0 0
    %945 = vmatprep.subr.bf16.mxu0 0
    %946 = vmatpush1.bf16.msra.mxu0 0
    %947 = vmatprep.subr.bf16.mxu0 0
    %948 = vmatpush1.bf16.msra.mxu0 0
    %949 = vmatprep.subr.bf16.mxu0 0
    %950 = vmatpush1.bf16.msra.mxu0 0
    %951 = vmatprep.subr.bf16.mxu0 0
    %952 = vmatpush1.bf16.msra.mxu0 0
    %953 = vmatprep.subr.bf16.mxu0 0
    %954 = vmatpush1.bf16.msra.mxu0 0
    %955 = vmatprep.subr.bf16.mxu0 0
    %956 = vmatpush1.bf16.msra.mxu0 %v940
    %957 = vmatprep.subr.bf16.mxu0 0
    %958 = vmatpush2.bf16.msra.mxu0 0
    %959 = vmatprep.subr.bf16.mxu0 0
    %960 = vmatpush2.bf16.msra.mxu0 0
    %961 = vmatprep.subr.bf16.mxu0 0
    %962 = vmatpush2.bf16.msra.mxu0 0
    %963 = vmatprep.subr.bf16.mxu0 0
    %964 = vmatpush2.bf16.msra.mxu0 0
    %965 = vmatprep.subr.bf16.mxu0 0
    %966 = vmatpush2.bf16.msra.mxu0 0
    %967 = vmatprep.subr.bf16.mxu0 0
    %968 = vmatpush2.bf16.msra.mxu0 0
    %969 = vmatprep.subr.bf16.mxu0 0
    %970 = vmatpush2.bf16.msra.mxu0 0
    %971 = vmatprep.subr.bf16.mxu0 0
    %972 = vmatpush2.bf16.msra.mxu0 0
    %973 = vmatprep.mubr.bf16.mxu0 0
    %974 = vmatmul.mubr.bf16.gmra.mxu0 %v284
    %v975 = vpop.f32.mrf.mxu0
    %v976 = vadd.f32 0.0, %v975
    %v977 = vpop.f32.mrf.mxu0
    %v978 = vpop.f32.mrf.mxu0
    %v979 = vadd.f32 0.0, %v978
    %v980 = vpop.f32.mrf.mxu0
    %981 = vdwg.mxu0
    %v983 = vlaneseq
    %v984 = vshrl.u32 %v983, 7
    %v985 = vsub.s32 0, %v984
    %v986 = vrot.slane %v817, %v985
    %v988 = vmul.f32 %v976, %v986
    %v989 = vmul.f32 %v979, %v986
    %v990 = vsel %vm391, %v988, 0.0
    %991 = vadd.xlane.f32.xlu0 %v990
    %v992 = vpop.xlane.xlu0 %991
    %v993 = vsel %vm391, %v989, 0.0
    %994 = vadd.xlane.f32.xlu0 %v993
    %v995 = vpop.xlane.xlu0 %994
    %v996 = vmul.f32 %v829, %v992
    %v997 = vmul.f32 %v830, %v995
    %v999 = vlaneseq
    %v1000 = vshrl.u32 %v999, 7
    %v1001 = vsub.s32 0, %v1000
    %v1002 = vrot.slane %v818, %v1001
    %v1004 = vadd.f32 %v996, %v1002
    %v1005 = vadd.f32 %v997, %v1002
    %1007 = vset.pattern.permute.xlu0 0
    %1008 = vperm.xlu0 %1007, %v1004
    %v1009 = vpop.permute.xlu0 %1008
    %1012 = vset.pattern.permute.xlu0 0
    %1013 = vperm.xlu0 %1012, %v1005
    %v1014 = vpop.permute.xlu0 %1013
    %v1016 = vmul.f32 %v1009, %v212
    %v1017 = vmul.f32 %v1014, %v213
    %v1018 = vsel %vm218, %v1016, 0.0
    %v1019 = vsel %vm218, %v1017, 0.0
    %v1020 = vadd.f32 %v1018, %v1019
    %v1021 = vrot.slane %v1020, 4
    %v1022 = vadd.f32 %v1020, %v1021
    %v1023 = vrot.slane %v1022, 2
    %v1024 = vadd.f32 %v1022, %v1023
    %v1025 = vrot.slane %v1024, 1
    %v1026 = vadd.f32 %v1024, %v1025
    %vm1027 = vcmp.gt.f32.partialorder %v766, 0.0
    %vm1028 = vcmp.gt.f32.partialorder %v1026, %v1009
    %vm1029 = vcmp.gt.f32.partialorder %v1026, %v1014
    %vm1030 = vcmp.eq.f32.partialorder %v1026, %v1009
    %vm1031 = vcmp.eq.f32.partialorder %v1026, %v1014
    %vm1032 = vmand %vm1030, %vm434
    %vm1033 = vmand %vm1031, %vm435
    %vm1034 = vmor %vm1028, %vm1032
    %vm1035 = vmor %vm1029, %vm1033
    %v1036 = vsel %vm1027, 1, 0
    %vm1037 = vcmp.eq.s32.totalorder %v1036, 1
    %vm1038 = vmand %vm1037, %vm1034
    %vm1039 = vmand %vm1037, %vm1035
    %v1040 = vsel %vm1038, 1.0, 0.0
    %v1041 = vsel %vm1039, 1.0, 0.0
    %v1042 = vsel %vm218, %v1040, 0.0
    %1043 = vadd.xlane.f32.xlu0 %v1042
    %v1044 = vpop.xlane.xlu0 %1043
    %v1045 = vsel %vm218, %v1041, 0.0
    %1046 = vadd.xlane.f32.xlu0 %v1045
    %v1047 = vpop.xlane.xlu0 %1046
    %vm1048 = vcmp.lt.f32.partialorder %v1044, 2.0
    %vm1049 = vcmp.lt.f32.partialorder %v1047, 2.0
    %vm1050 = vmand %vm1048, %vm794
    %vm1051 = vmand %vm1049, %vm795
    %v1052 = vsel %vm1050, 1.0, 0.0
    %v1053 = vsel %vm1051, 1.0, 0.0
    %v1054 = vtanh.pop %v1004
    %v1055 = vtanh.pop %v1005
    %1057 = vset.pattern.permute.xlu0 0
    %1058 = vperm.xlu0 %1057, %v1054
    %v1059 = vpop.permute.xlu0 %1058
    %1062 = vset.pattern.permute.xlu0 0
    %1063 = vperm.xlu0 %1062, %v1055
    %v1064 = vpop.permute.xlu0 %1063
    %v1066 = vmul.f32 %v936, %v1059
    %v1067 = vmul.f32 %v937, %v1064
    %v1068 = vmul.f32 %v1066, %v1052
    %v1069 = vmul.f32 %v1067, %v1053
    %v1070 = vsel %vm391, %v1068, 0.0
    %v1071 = vsel %vm391, %v1069, 0.0
    %v1072 = vadd.f32 %v1070, %v1071
    %v1073 = vrot.slane %v1072, 4
    %v1074 = vadd.f32 %v1072, %v1073
    %v1075 = vrot.slane %v1074, 2
    %v1076 = vadd.f32 %v1074, %v1075
    %v1077 = vrot.slane %v1076, 1
    %v1078 = vadd.f32 %v1076, %v1077
    %v1079 = vmul.f32 %v1078, 0.5
    %v1080 = vadd.f32 %v793, %v1079
    %vm1081 = vcmp.gt.f32.partialorder %v1052, 0.0
    %vm1082 = vcmp.gt.f32.partialorder %v1053, 0.0
    %v1083 = vsel %vm1081, 1, 0
    %v1084 = vsel %vm1082, 1, 0
    %vm1085 = vcmp.eq.s32.totalorder %v1083, 1
    %vm1086 = vcmp.eq.s32.totalorder %v1084, 1
    %v1087 = vsel %vm1085, %v1068, -inf
    %v1088 = vsel %vm1086, %v1069, -inf
    %v1089 = vsel %vm391, %v1087, -inf
    %v1090 = vsel %vm391, %v1088, -inf
    %v1091 = vmax.f32 %v1089, %v1090
    %v1092 = vrot.slane %v1091, 4
    %v1093 = vmax.f32 %v1091, %v1092
    %v1094 = vrot.slane %v1093, 2
    %v1095 = vmax.f32 %v1093, %v1094
    %v1096 = vrot.slane %v1095, 1
    %v1097 = vmax.f32 %v1095, %v1096
    %v1098 = vadd.f32 %v811, %v1097
    %v1099 = vpack.c.bf16 %v1080, %v1080
    %v1100 = vld [vmem:[%s14] sm:$0xff]
    %v1101 = vld [vmem:[%s14 + $0x8] sm:$0xff]
    %v1102 = vld [vmem:[%s14 + $0x10] sm:$0xff]
    %v1103 = vld [vmem:[%s14 + $0x18] sm:$0xff]
    %v1104 = vpack.c.bf16 %v1101, %v1100
    %v1105 = vpack.c.bf16 %v1103, %v1102
    %v1106 = vpack.c.bf16 %v1098, %v1098
    %v1107 = vld [vmem:[#allocation19] sm:$0xff]
    %v1108 = vld [vmem:[#allocation19 + $0x8] sm:$0xff]
    %v1109 = vld [vmem:[#allocation19 + $0x10] sm:$0xff]
    %v1110 = vld [vmem:[#allocation19 + $0x18] sm:$0xff]
    %v1111 = vpack.c.bf16 %v1108, %v1107
    %v1112 = vpack.c.bf16 %v1110, %v1109
    %v1114 = vsel %vm391, %v1106, 0
    %1116 = vmatprep.subr.bf16.mxu0 0
    %1117 = vmatpush1.bf16.msra.mxu0 0
    %1118 = vmatprep.subr.bf16.mxu0 0
    %1119 = vmatpush1.bf16.msra.mxu0 0
    %1120 = vmatprep.subr.bf16.mxu0 0
    %1121 = vmatpush1.bf16.msra.mxu0 0
    %1122 = vmatprep.subr.bf16.mxu0 0
    %1123 = vmatpush1.bf16.msra.mxu0 0
    %1124 = vmatprep.subr.bf16.mxu0 0
    %1125 = vmatpush1.bf16.msra.mxu0 0
    %1126 = vmatprep.subr.bf16.mxu0 0
    %1127 = vmatpush1.bf16.msra.mxu0 0
    %1128 = vmatprep.subr.bf16.mxu0 0
    %1129 = vmatpush1.bf16.msra.mxu0 %v1112
    %1130 = vmatprep.subr.bf16.mxu0 0
    %1131 = vmatpush1.bf16.msra.mxu0 %v1111
    %1132 = vmatprep.subr.bf16.mxu0 0
    %1133 = vmatpush2.bf16.msra.mxu0 0
    %1134 = vmatprep.subr.bf16.mxu0 0
    %1135 = vmatpush2.bf16.msra.mxu0 0
    %1136 = vmatprep.subr.bf16.mxu0 0
    %1137 = vmatpush2.bf16.msra.mxu0 0
    %1138 = vmatprep.subr.bf16.mxu0 0
    %1139 = vmatpush2.bf16.msra.mxu0 0
    %1140 = vmatprep.subr.bf16.mxu0 0
    %1141 = vmatpush2.bf16.msra.mxu0 0
    %1142 = vmatprep.subr.bf16.mxu0 0
    %1143 = vmatpush2.bf16.msra.mxu0 0
    %1144 = vmatprep.subr.bf16.mxu0 0
    %1145 = vmatpush2.bf16.msra.mxu0 0
    %1146 = vmatprep.subr.bf16.mxu0 0
    %1147 = vmatpush2.bf16.msra.mxu0 0
    %1148 = vmatprep.mubr.bf16.mxu0 0
    %1149 = vmatmul.mubr.bf16.gmra.mxu0 %v1114
    %v1150 = vpop.f32.mrf.mxu0
    %v1151 = vadd.f32 0.0, %v1150
    %v1152 = vpop.f32.mrf.mxu0
    %v1153 = vpop.f32.mrf.mxu0
    %v1154 = vpop.f32.mrf.mxu0
    %1155 = vdwg.mxu0
    %v1157 = vsel %vm391, %v1099, 0
    %1159 = vmatprep.subr.bf16.mxu0 0
    %1160 = vmatpush1.bf16.msra.mxu0 0
    %1161 = vmatprep.subr.bf16.mxu0 0
    %1162 = vmatpush1.bf16.msra.mxu0 0
    %1163 = vmatprep.subr.bf16.mxu0 0
    %1164 = vmatpush1.bf16.msra.mxu0 0
    %1165 = vmatprep.subr.bf16.mxu0 0
    %1166 = vmatpush1.bf16.msra.mxu0 0
    %1167 = vmatprep.subr.bf16.mxu0 0
    %1168 = vmatpush1.bf16.msra.mxu0 0
    %1169 = vmatprep.subr.bf16.mxu0 0
    %1170 = vmatpush1.bf16.msra.mxu0 0
    %1171 = vmatprep.subr.bf16.mxu0 0
    %1172 = vmatpush1.bf16.msra.mxu0 %v1105
    %1173 = vmatprep.subr.bf16.mxu0 0
    %1174 = vmatpush1.bf16.msra.mxu0 %v1104
    %1175 = vmatprep.subr.bf16.mxu0 0
    %1176 = vmatpush2.bf16.msra.mxu0 0
    %1177 = vmatprep.subr.bf16.mxu0 0
    %1178 = vmatpush2.bf16.msra.mxu0 0
    %1179 = vmatprep.subr.bf16.mxu0 0
    %1180 = vmatpush2.bf16.msra.mxu0 0
    %1181 = vmatprep.subr.bf16.mxu0 0
    %1182 = vmatpush2.bf16.msra.mxu0 0
    %1183 = vmatprep.subr.bf16.mxu0 0
    %1184 = vmatpush2.bf16.msra.mxu0 0
    %1185 = vmatprep.subr.bf16.mxu0 0
    %1186 = vmatpush2.bf16.msra.mxu0 0
    %1187 = vmatprep.subr.bf16.mxu0 0
    %1188 = vmatpush2.bf16.msra.mxu0 0
    %1189 = vmatprep.subr.bf16.mxu0 0
    %1190 = vmatpush2.bf16.msra.mxu0 0
    %1191 = vmatprep.mubr.bf16.mxu0 0
    %1192 = vmatmul.mubr.bf16.gmra.mxu0 %v1157
    %v1193 = vpop.f32.mrf.mxu0
    %v1194 = vadd.f32 %v1151, %v1193
    %v1195 = vpop.f32.mrf.mxu0
    %v1196 = vpop.f32.mrf.mxu0
    %v1197 = vpop.f32.mrf.mxu0
    %1198 = vdwg.mxu0
    %v1199 = vld [vmem:[%s16] sm:$0x1]
    %v1200 = vadd.f32 %v1194, %v1199
    %v1201 = vmax.f32 %v1200, 0.0
    %v1202 = vpack.c.bf16 %v1201, %v1201
    %v1203 = vld [vmem:[%s17] sm:$0xff]
    %v1204 = vld [vmem:[%s17 + $0x8] sm:$0xff]
    %v1205 = vld [vmem:[%s17 + $0x10] sm:$0xff]
    %v1206 = vld [vmem:[%s17 + $0x18] sm:$0xff]
    %v1207 = vpack.c.bf16 %v1204, %v1203
    %v1208 = vpack.c.bf16 %v1206, %v1205
    %v1209 = vld [vmem:[%s18] sm:$0x1]
    %v1211 = vsel %vm391, %v1202, 0
    %1213 = vmatprep.subr.bf16.mxu0 0
    %1214 = vmatpush1.bf16.msra.mxu0 0
    %1215 = vmatprep.subr.bf16.mxu0 0
    %1216 = vmatpush1.bf16.msra.mxu0 0
    %1217 = vmatprep.subr.bf16.mxu0 0
    %1218 = vmatpush1.bf16.msra.mxu0 0
    %1219 = vmatprep.subr.bf16.mxu0 0
    %1220 = vmatpush1.bf16.msra.mxu0 0
    %1221 = vmatprep.subr.bf16.mxu0 0
    %1222 = vmatpush1.bf16.msra.mxu0 0
    %1223 = vmatprep.subr.bf16.mxu0 0
    %1224 = vmatpush1.bf16.msra.mxu0 0
    %1225 = vmatprep.subr.bf16.mxu0 0
    %1226 = vmatpush1.bf16.msra.mxu0 %v1208
    %1227 = vmatprep.subr.bf16.mxu0 0
    %1228 = vmatpush1.bf16.msra.mxu0 %v1207
    %1229 = vmatprep.subr.bf16.mxu0 0
    %1230 = vmatpush2.bf16.msra.mxu0 0
    %1231 = vmatprep.subr.bf16.mxu0 0
    %1232 = vmatpush2.bf16.msra.mxu0 0
    %1233 = vmatprep.subr.bf16.mxu0 0
    %1234 = vmatpush2.bf16.msra.mxu0 0
    %1235 = vmatprep.subr.bf16.mxu0 0
    %1236 = vmatpush2.bf16.msra.mxu0 0
    %1237 = vmatprep.subr.bf16.mxu0 0
    %1238 = vmatpush2.bf16.msra.mxu0 0
    %1239 = vmatprep.subr.bf16.mxu0 0
    %1240 = vmatpush2.bf16.msra.mxu0 0
    %1241 = vmatprep.subr.bf16.mxu0 0
    %1242 = vmatpush2.bf16.msra.mxu0 0
    %1243 = vmatprep.subr.bf16.mxu0 0
    %1244 = vmatpush2.bf16.msra.mxu0 0
    %1245 = vmatprep.mubr.bf16.mxu0 0
    %1246 = vmatmul.mubr.bf16.gmra.mxu0 %v1211
    %v1247 = vpop.f32.mrf.mxu0
    %v1248 = vadd.f32 %v1209, %v1247
    %v1249 = vpop.f32.mrf.mxu0
    %v1250 = vpop.f32.mrf.mxu0
    %v1251 = vpop.f32.mrf.mxu0
    %1252 = vdwg.mxu0
    %v1253 = vmax.f32 %v1248, 0.0
    %v1254 = vpack.c.bf16 %v1253, %v1253
    %v1255 = vld [vmem:[#allocation20] sm:$0xff]
    %v1256 = vld [vmem:[#allocation20 + $0x8] sm:$0xff]
    %v1257 = vpack.c.bf16 %v1256, %v1255
    %v1258 = vld [vmem:[%s20] sm:$0x1]
    %v1260 = vsel %vm218, %v1254, 0
    %1262 = vmatprep.subr.bf16.mxu0 0
    %1263 = vmatpush1.bf16.msra.mxu0 0
    %1264 = vmatprep.subr.bf16.mxu0 0
    %1265 = vmatpush1.bf16.msra.mxu0 0
    %1266 = vmatprep.subr.bf16.mxu0 0
    %1267 = vmatpush1.bf16.msra.mxu0 0
    %1268 = vmatprep.subr.bf16.mxu0 0
    %1269 = vmatpush1.bf16.msra.mxu0 0
    %1270 = vmatprep.subr.bf16.mxu0 0
    %1271 = vmatpush1.bf16.msra.mxu0 0
    %1272 = vmatprep.subr.bf16.mxu0 0
    %1273 = vmatpush1.bf16.msra.mxu0 0
    %1274 = vmatprep.subr.bf16.mxu0 0
    %1275 = vmatpush1.bf16.msra.mxu0 0
    %1276 = vmatprep.subr.bf16.mxu0 0
    %1277 = vmatpush1.bf16.msra.mxu0 %v1257
    %1278 = vmatprep.subr.bf16.mxu0 0
    %1279 = vmatpush2.bf16.msra.mxu0 0
    %1280 = vmatprep.subr.bf16.mxu0 0
    %1281 = vmatpush2.bf16.msra.mxu0 0
    %1282 = vmatprep.subr.bf16.mxu0 0
    %1283 = vmatpush2.bf16.msra.mxu0 0
    %1284 = vmatprep.subr.bf16.mxu0 0
    %1285 = vmatpush2.bf16.msra.mxu0 0
    %1286 = vmatprep.subr.bf16.mxu0 0
    %1287 = vmatpush2.bf16.msra.mxu0 0
    %1288 = vmatprep.subr.bf16.mxu0 0
    %1289 = vmatpush2.bf16.msra.mxu0 0
    %1290 = vmatprep.subr.bf16.mxu0 0
    %1291 = vmatpush2.bf16.msra.mxu0 0
    %1292 = vmatprep.subr.bf16.mxu0 0
    %1293 = vmatpush2.bf16.msra.mxu0 0
    %1294 = vmatprep.mubr.bf16.mxu0 0
    %1295 = vmatmul.mubr.bf16.gmra.mxu0 %v1260
    %v1296 = vpop.f32.mrf.mxu0
    %v1297 = vadd.f32 %v1258, %v1296
    %v1298 = vpop.f32.mrf.mxu0
    %v1299 = vpop.f32.mrf.mxu0
    %v1300 = vpop.f32.mrf.mxu0
    %1301 = vdwg.mxu0
    %vm1302 = vcmask 1040384
    %v1303 = vsel %vm1302, %v1297, -inf
    %1304 = vmax.xlane.f32.xlu0 %v1303
    %v1305 = vpop.xlane.xlu0 %1304
    %v1306 = vsub.f32 %v1297, %v1305
    %v1307 = vmul.f32 %v1306, 1.442695
    %v1308 = vpow.pop %v1307
    %v1309 = vsel %vm1302, %v1308, 0.0
    %1310 = vadd.xlane.f32.xlu0 %v1309
    %v1311 = vpop.xlane.xlu0 %1310
    %v1312 = vlog2.pop %v1311
    %v1313 = vmul.f32 %v1312, 0.6931472
    %v1314 = vsub.f32 %v1306, %v1313
    %1315 = vst [vmem:[#allocation22] sm:$0x1] %v1314
    // Predicated region
    $region126: #{sag_network_forward.1} parent=1 // pred_check
      _
    $region127: #{sag_network_forward.1} parent=1 // pred_check_branch
      %1317 = sbr.rel (0) target = $region129
    $region128: #{sag_network_forward.1} parent=1 // pred_region
      %s1319 = ssub.s32 16, 16
      %1320 = vsyncadd [#allocation7], %s1319
      %s1322 = sshll.u32 [#allocation22], 4
      %s1323 = int_to_ptr.vmem [resolvable:$true] %s1322
      %1325 = dma.vmem_to_hbm [thread:$0]  %s1323, 16, %s21, [#allocation7]
    $region129: #{sag_network_forward.1} parent=1 // pred_fallthru
      _
    // Predicated region
    $region130: #{sag_network_forward.1} parent=1 // pred_check
      _
    $region131: #{sag_network_forward.1} parent=1 // pred_check_branch
      %1327 = sbr.rel (0) target = $region133
    $region132: #{sag_network_forward.1} parent=1 // pred_region
      %1328 = dma.done [#allocation7], 16
    $region133: #{sag_network_forward.1} parent=1 // pred_fallthru
      _
    %1329 = vsyncpa [#allocation6], 1
    %1330 = vsyncpa [#allocation9], 1
    %1331 = vsyncpa [#allocation12], 1
    %1332 = vsyncpa [#allocation15], 1
    %1333 = vsyncpa [#allocation18], 1
    %1334 = vsyncpa [#allocation21], 1
    %1335 = vsyncpa [#allocation7], 1

</llo_original>
